<compile_context>
chip_gen: v6e
topology: v6e:2x2x1
jax: 0.10.0
libtpu: 0.0.40
codegen_flags: <defaults>
</compile_context>

<pallas_src>
import functools

import jax
import jax.numpy as jnp
from jax import lax
from jax.experimental import pallas as pl
from jax.experimental.pallas import tpu as pltpu

KERNEL_SIZE = 7
PAD = KERNEL_SIZE // 2

_LANE_TILE_CAP = 16 * 1024      # max lanes per input block along flattened H*W


def _round_up(a, m):
    return ((a + m - 1) // m) * m


def _vmem_capacity_bytes():
    try:
        return int(pltpu.get_tpu_info().vmem_capacity_bytes)
    except Exception:
        return 64 << 20         # conservative fallback (v7x physical VMEM)


def _sublane_multiple(itemsize):
    return {4: 8, 2: 16, 1: 32}.get(itemsize, 8)


def _pick_tiles(batch, num_ch, hw, itemsize, budget_bytes,
                channel_tile=None, lane_tile=None):
    """Channel / flattened-spatial tiles, with lane+sublane padding accounted."""
    sub = _sublane_multiple(itemsize)
    hw_pad = _round_up(hw, 128)

    if lane_tile is not None:
        hw_t = lane_tile
    elif hw_pad <= _LANE_TILE_CAP:
        hw_t = hw                               # full spatial extent (always legal)
        if batch == 1 and hw_pad >= 256:
            # B == 1 starves one TensorCore on v7x: split the spatial axis instead.
            hw_t = _round_up(pl.cdiv(hw_pad, 2), 128)
    else:
        hw_t = _LANE_TILE_CAP
    n_hw = pl.cdiv(hw, hw_t)

    if channel_tile is not None:
        ct = channel_tile
    else:
        per_ch = _round_up(hw_t, 128) * itemsize      # lane-padded bytes per channel row
        ct_max = max(1, budget_bytes // per_ch)
        if num_ch <= ct_max:
            ct = num_ch
        else:
            ct = max(sub, (ct_max // sub) * sub)      # keep blocks sublane-aligned
        ct = min(num_ch, ct)
    n_c = pl.cdiv(num_ch, ct)
    return ct, n_c, hw_t, n_hw


def _make_band_weights(w, width):
    """Fold kx taps into banded matrices: band[c, ky, wi, wo] = w[0, c, ky, wi-wo+PAD]
    inside the band, 0 outside (W-axis zero padding is implicit in the band).
    The two conv input channels are stacked along the contraction axis so the
    conv kernel does one (H, 2W) @ (2W, W) MXU matmul per ky."""
    taps = w.reshape(2, KERNEL_SIZE, KERNEL_SIZE).astype(jnp.float32)
    wi = jnp.arange(width)[:, None]
    wo = jnp.arange(width)[None, :]
    diff = wi - wo + PAD                           # (W, W)
    valid = (diff >= 0) & (diff < KERNEL_SIZE)
    idx = jnp.clip(diff, 0, KERNEL_SIZE - 1)
    band = jnp.where(valid[None, None], taps[:, :, idx], jnp.float32(0.0))  # (2,K,W,W)
    return jnp.concatenate([band[0], band[1]], axis=1)                       # (K,2W,W)


def _channel_reduce_kernel(x_ref, maps_ref, sum_ref, max_ref, *,
                           num_channels, channel_tile, mask_partial):
    # x_ref:    (1, ct, hw_t)  native dtype  current (batch, channel, spatial) block
    # maps_ref: (1, 2, hw_t)   f32           [mean; max], resident over the C axis
    # sum_ref / max_ref: (1, hw_t) f32 scratch  running channel sum / max
    ci = pl.program_id(2)

    x = x_ref[0].astype(jnp.float32)               # (ct, hw_t), upcast in-vreg
    if mask_partial:
        ch = lax.broadcasted_iota(jnp.int32, x.shape, 0)
        valid = ch < (num_channels - ci * channel_tile)
        x_sum = jnp.where(valid, x, 0.0)
        x_max = jnp.where(valid, x, -jnp.inf)
    else:
        x_sum = x
        x_max = x
    part_sum = jnp.sum(x_sum, axis=0, keepdims=True)   # (1, hw_t)
    part_max = jnp.max(x_max, axis=0, keepdims=True)   # (1, hw_t)

    @pl.when(ci == 0)
    def _init():
        sum_ref[...] = part_sum
        max_ref[...] = part_max

    @pl.when(ci > 0)
    def _accumulate():
        sum_ref[...] = sum_ref[...] + part_sum
        max_ref[...] = jnp.maximum(max_ref[...], part_max)

    @pl.when(ci == pl.num_programs(2) - 1)
    def _finalize():
        maps_ref[0, 0:1, :] = sum_ref[...] * (1.0 / num_channels)   # channel mean
        maps_ref[0, 1:2, :] = max_ref[...]                           # channel max


def _conv_sigmoid_kernel(bias_ref, band_ref, maps_ref, o_ref, *, out_h):
    # bias_ref: SMEM (1,)
    # band_ref: VMEM (K, 2W, W)        per-ky banded weights, both channels stacked
    # maps_ref: VMEM (1, H+2*PAD, 2W)  [avg | max] rows, rows already zero-padded
    # o_ref:    VMEM (1, 1, H, W)
    pc = maps_ref[0]                                   # (H + 2*PAD, 2W)
    # 7 MXU matmuls with a 2W contraction; two accumulators keep the add chain short.
    acc0 = jnp.dot(pc[0:out_h, :], band_ref[0], preferred_element_type=jnp.float32)
    acc1 = jnp.dot(pc[1:1 + out_h, :], band_ref[1], preferred_element_type=jnp.float32)
    for ky in range(2, KERNEL_SIZE):
        contrib = jnp.dot(pc[ky:ky + out_h, :], band_ref[ky],
                          preferred_element_type=jnp.float32)
        if ky % 2 == 0:
            acc0 = acc0 + contrib
        else:
            acc1 = acc1 + contrib
    y = acc0 + acc1 + bias_ref[0]
    o_ref[0, 0] = jax.nn.sigmoid(y).astype(o_ref.dtype)


@functools.partial(jax.jit, static_argnames=("channel_tile", "lane_tile"))
def spatial_attention(x, w, b, *, channel_tile=None, lane_tile=None):
    """x: (B, C, H, W) float dtype; w: (1, 2, K, K); b: (1,) -> (B, 1, H, W) f32."""
    B, C, H, W = x.shape
    HW = H * W
    itemsize = x.dtype.itemsize
    sub = _sublane_multiple(itemsize)

    vmem_cap = _vmem_capacity_bytes()
    budget = min(max(vmem_cap // 10, 2 << 20), 16 << 20)
    ct, n_c, hw_t, n_hw = _pick_tiles(B, C, HW, itemsize, budget,
                                      channel_tile, lane_tile)

    # ---------------- pass 1: channel mean / max (flattened spatial axis) ----
    x_flat = x.reshape(B, C, HW)                  # free row-major reshape
    hw_lanes = _round_up(hw_t, 128)
    est1 = (2 * _round_up(ct, sub) * hw_lanes * itemsize   # input block, double-buffered
            + 2 * 8 * hw_lanes * 4                         # (1,2,hw) out block, dbl-buf
            + 2 * 8 * hw_lanes * 4                         # f32 sum/max scratch
            + (2 << 20))                                   # slack
    vmem1 = int(min(max(est1, 8 << 20), int(0.8 * vmem_cap)))

    reduce_kernel = functools.partial(
        _channel_reduce_kernel, num_channels=C, channel_tile=ct,
        mask_partial=(C % ct != 0))

    maps = pl.pallas_call(
        reduce_kernel,
        out_shape=jax.ShapeDtypeStruct((B, 2, HW), jnp.float32),
        grid_spec=pltpu.PrefetchScalarGridSpec(
            num_scalar_prefetch=0,
            grid=(B, n_hw, n_c),                  # channel-reduction axis last
            in_specs=[pl.BlockSpec((1, ct, hw_t), lambda bi, si, ci: (bi, ci, si))],
            out_specs=pl.BlockSpec((1, 2, hw_t), lambda bi, si, ci: (bi, 0, si)),
            scratch_shapes=[pltpu.VMEM((1, hw_t), jnp.float32),
                            pltpu.VMEM((1, hw_t), jnp.float32)]),
        compiler_params=pltpu.CompilerParams(
            dimension_semantics=("parallel", "parallel", "arbitrary"),
            vmem_limit_bytes=vmem1),
    )(x_flat)

    # ---------------- pass 2: 7x7 conv (2 -> 1) + bias + sigmoid -------------
    # Wrapper-side layout plumbing on the tiny (B, 2, H, W) maps (negligible
    # bytes): put [avg | max] side by side along the lane axis and zero-pad the
    # rows, so the kernel needs no in-kernel concat / reshape / padding.
    maps_rows = maps.reshape(B, 2, H, W).transpose(0, 2, 1, 3).reshape(B, H, 2 * W)
    maps_padded = jnp.pad(maps_rows, ((0, 0), (PAD, PAD), (0, 0)))  # (B, H+2p, 2W)

    bands = _make_band_weights(w, W)              # (K, 2W, W) f32
    bias = b.reshape(1).astype(jnp.float32)

    est2 = (2 * _round_up(H + 2 * PAD, 8) * _round_up(2 * W, 128) * 4
            + 2 * KERNEL_SIZE * _round_up(2 * W, 8) * _round_up(W, 128) * 4
            + 2 * _round_up(H, 8) * _round_up(W, 128) * 4
            + (2 << 20))
    vmem2 = int(min(max(est2, 8 << 20), int(0.8 * vmem_cap)))
    # TODO(synk): for very large W (>= ~512) the (K, 2W, W) bands approach the
    # v7x VMEM limit; tile the band matmul over 128-lane column blocks of W, or
    # keep the bands in HBM (memory_space=pl.ANY) and DMA them in-kernel.

    conv_kernel = functools.partial(_conv_sigmoid_kernel, out_h=H)

    out = pl.pallas_call(
        conv_kernel,
        out_shape=jax.ShapeDtypeStruct((B, 1, H, W), jnp.float32),
        grid_spec=pltpu.PrefetchScalarGridSpec(
            num_scalar_prefetch=0,
            grid=(B,),
            in_specs=[
                pl.BlockSpec(memory_space=pltpu.MemorySpace.SMEM),            # bias
                pl.BlockSpec((KERNEL_SIZE, 2 * W, W), lambda bi: (0, 0, 0)),   # bands
                pl.BlockSpec((1, H + 2 * PAD, 2 * W), lambda bi: (bi, 0, 0)),  # maps
            ],
            out_specs=pl.BlockSpec((1, 1, H, W), lambda bi: (bi, 0, 0, 0)),
        ),
        compiler_params=pltpu.CompilerParams(
            dimension_semantics=("parallel",),
            vmem_limit_bytes=vmem2),
    )(bias, bands, maps_padded)
    return out


def spatial_attention_ref(x, w, b):
    """Pure-JAX reference matching the PyTorch forward (computed in f32)."""
    x = x.astype(jnp.float32)
    avg_out = jnp.mean(x, axis=1, keepdims=True)
    max_out = jnp.max(x, axis=1, keepdims=True)
    concat = jnp.concatenate([avg_out, max_out], axis=1)        # (B, 2, H, W)
    y = lax.conv_general_dilated(
        concat, w.astype(jnp.float32), window_strides=(1, 1),
        padding=((PAD, PAD), (PAD, PAD)),
        dimension_numbers=("NCHW", "OIHW", "NCHW"))
    return jax.nn.sigmoid(y + b.reshape(1, -1, 1, 1))


if __name__ == "__main__":
    key = jax.random.PRNGKey(0)
    kx, kw, kb, kx2 = jax.random.split(key, 4)

    # Deterministic Conv2d(2, 1, 7, padding=3) params (PyTorch-style uniform
    # init bound = 1/sqrt(fan_in), fan_in = 2*7*7).
    fan_in = 2 * KERNEL_SIZE * KERNEL_SIZE
    bound = 1.0 / (fan_in ** 0.5)
    w = jax.random.uniform(kw, (1, 2, KERNEL_SIZE, KERNEL_SIZE),
                           minval=-bound, maxval=bound, dtype=jnp.float32)
    b = jax.random.uniform(kb, (1,), minval=-bound, maxval=bound,
                           dtype=jnp.float32)

    # 1) f32 input, default tiling.
    B, C, H, W = 2, 4, 16, 16
    x = jax.random.normal(kx, (B, C, H, W), dtype=jnp.float32)
    out = jax.block_until_ready(spatial_attention(x, w, b))
    ref = jax.block_until_ready(spatial_attention_ref(x, w, b))
    assert out.shape == (B, 1, H, W), out.shape
    assert jnp.allclose(out, ref, atol=1e-5, rtol=1e-5), (
        float(jnp.max(jnp.abs(out - ref))))

    # 2) bf16 input: native-dtype DMA (half the HBM bytes), f32 accumulation.
    x_bf16 = x.astype(jnp.bfloat16)
    out_bf = jax.block_until_ready(spatial_attention(x_bf16, w, b))
    ref_bf = jax.block_until_ready(spatial_attention_ref(x_bf16, w, b))
    assert jnp.allclose(out_bf, ref_bf, atol=1e-4, rtol=1e-4), (
        float(jnp.max(jnp.abs(out_bf - ref_bf))))

    # 3) channel tiling with masking (C % ct != 0) + spatial split (B == 1 path).
    x3 = jax.random.normal(kx2, (1, 12, 16, 16), dtype=jnp.float32)
    out3 = jax.block_until_ready(
        spatial_attention(x3, w, b, channel_tile=8, lane_tile=128))
    ref3 = jax.block_until_ready(spatial_attention_ref(x3, w, b))
    assert jnp.allclose(out3, ref3, atol=1e-5, rtol=1e-5), (
        float(jnp.max(jnp.abs(out3 - ref3))))

    print("KERNEL_OK")
</pallas_src>

<mosaic_0001>
module attributes {stable_mosaic.version = 11 : i64} {
  func.func @_channel_reduce_kernel(%arg0: i32, %arg1: i32, %arg2: i32, %arg3: memref<1x4x256xf32, #tpu.memory_space<vmem>>, %arg4: memref<1x2x256xf32, #tpu.memory_space<vmem>>, %arg5: memref<1x256xf32, #tpu.memory_space<vmem>>, %arg6: memref<1x256xf32, #tpu.memory_space<vmem>>) attributes {dimension_semantics = [#tpu.dimension_semantics<parallel>, #tpu.dimension_semantics<parallel>, #tpu.dimension_semantics<arbitrary>], iteration_bounds = array<i64: 2, 1, 1>, scalar_prefetch = 0 : i64, scratch_operands = 2 : i64, tpu.core_type = #tpu.core_type<tc>, window_params = [{transform_indices = @transform_0, window_bounds = array<i64: 1, 4, 256>}, {transform_indices = @transform_1, window_bounds = array<i64: 1, 2, 256>}]} {
    %c0 = arith.constant 0 : index
    %c0_0 = arith.constant 0 : index
    %c0_1 = arith.constant 0 : index
    %0 = vector.load %arg3[%c0, %c0_0, %c0_1] : memref<1x4x256xf32, #tpu.memory_space<vmem>>, vector<1x4x256xf32>
    %1 = vector.shape_cast %0 : vector<1x4x256xf32> to vector<4x256xf32>
    %cst = arith.constant dense<0.000000e+00> : vector<256xf32>
    %2 = vector.multi_reduction <add>, %1, %cst [0] : vector<4x256xf32> to vector<256xf32>
    %3 = vector.shape_cast %2 : vector<256xf32> to vector<1x256xf32>
    %cst_2 = arith.constant dense<0xFF800000> : vector<256xf32>
    %4 = vector.multi_reduction <maximumf>, %1, %cst_2 [0] : vector<4x256xf32> to vector<256xf32>
    %5 = vector.shape_cast %4 : vector<256xf32> to vector<1x256xf32>
    %c0_i32 = arith.constant 0 : i32
    %6 = arith.cmpi eq, %arg2, %c0_i32 : i32
    %7 = arith.extui %6 : i1 to i32
    %c0_i32_3 = arith.constant 0 : i32
    %8 = arith.cmpi ne, %7, %c0_i32_3 : i32
    scf.if %8 {
      %c0_8 = arith.constant 0 : index
      %c0_9 = arith.constant 0 : index
      %15 = vector.load %arg5[%c0_8, %c0_9] : memref<1x256xf32, #tpu.memory_space<vmem>>, vector<1x256xf32>
      tpu.vector_store %arg5[%c0_8, %c0_9], %3 {strides = array<i32>} : memref<1x256xf32, #tpu.memory_space<vmem>>, vector<1x256xf32>,
      %c0_10 = arith.constant 0 : index
      %c0_11 = arith.constant 0 : index
      %16 = vector.load %arg6[%c0_10, %c0_11] : memref<1x256xf32, #tpu.memory_space<vmem>>, vector<1x256xf32>
      tpu.vector_store %arg6[%c0_10, %c0_11], %5 {strides = array<i32>} : memref<1x256xf32, #tpu.memory_space<vmem>>, vector<1x256xf32>,
    } else {
    }
    %c0_i32_4 = arith.constant 0 : i32
    %9 = arith.cmpi sgt, %arg2, %c0_i32_4 : i32
    %10 = arith.extui %9 : i1 to i32
    %c0_i32_5 = arith.constant 0 : i32
    %11 = arith.cmpi ne, %10, %c0_i32_5 : i32
    scf.if %11 {
      %c0_8 = arith.constant 0 : index
      %c0_9 = arith.constant 0 : index
      %15 = vector.load %arg5[%c0_8, %c0_9] : memref<1x256xf32, #tpu.memory_space<vmem>>, vector<1x256xf32>
      %16 = arith.addf %15, %3 : vector<1x256xf32>
      %c0_10 = arith.constant 0 : index
      %c0_11 = arith.constant 0 : index
      %17 = vector.load %arg5[%c0_10, %c0_11] : memref<1x256xf32, #tpu.memory_space<vmem>>, vector<1x256xf32>
      tpu.vector_store %arg5[%c0_10, %c0_11], %16 {strides = array<i32>} : memref<1x256xf32, #tpu.memory_space<vmem>>, vector<1x256xf32>,
      %c0_12 = arith.constant 0 : index
      %c0_13 = arith.constant 0 : index
      %18 = vector.load %arg6[%c0_12, %c0_13] : memref<1x256xf32, #tpu.memory_space<vmem>>, vector<1x256xf32>
      %19 = arith.maximumf %18, %5 : vector<1x256xf32>
      %c0_14 = arith.constant 0 : index
      %c0_15 = arith.constant 0 : index
      %20 = vector.load %arg6[%c0_14, %c0_15] : memref<1x256xf32, #tpu.memory_space<vmem>>, vector<1x256xf32>
      tpu.vector_store %arg6[%c0_14, %c0_15], %19 {strides = array<i32>} : memref<1x256xf32, #tpu.memory_space<vmem>>, vector<1x256xf32>,
    } else {
    }
    %c0_i32_6 = arith.constant 0 : i32
    %12 = arith.cmpi eq, %arg2, %c0_i32_6 : i32
    %13 = arith.extui %12 : i1 to i32
    %c0_i32_7 = arith.constant 0 : i32
    %14 = arith.cmpi ne, %13, %c0_i32_7 : i32
    scf.if %14 {
      %c0_8 = arith.constant 0 : index
      %c0_9 = arith.constant 0 : index
      %15 = vector.load %arg5[%c0_8, %c0_9] : memref<1x256xf32, #tpu.memory_space<vmem>>, vector<1x256xf32>
      %cst_10 = arith.constant 2.500000e-01 : f32
      %16 = vector.broadcast %cst_10 : f32 to vector<1x256xf32>
      %17 = arith.mulf %15, %16 : vector<1x256xf32>
      %c0_11 = arith.constant 0 : index
      %c0_12 = arith.constant 0 : index
      %c0_13 = arith.constant 0 : index
      %18 = vector.load %arg4[%c0_11, %c0_12, %c0_13] : memref<1x2x256xf32, #tpu.memory_space<vmem>>, vector<1x1x256xf32>
      %19 = vector.shape_cast %18 : vector<1x1x256xf32> to vector<1x256xf32>
      %20 = vector.shape_cast %17 : vector<1x256xf32> to vector<1x1x256xf32>
      tpu.vector_store %arg4[%c0_11, %c0_12, %c0_13], %20 {strides = array<i32>} : memref<1x2x256xf32, #tpu.memory_space<vmem>>, vector<1x1x256xf32>,
      %c0_14 = arith.constant 0 : index
      %c0_15 = arith.constant 0 : index
      %21 = vector.load %arg6[%c0_14, %c0_15] : memref<1x256xf32, #tpu.memory_space<vmem>>, vector<1x256xf32>
      %c0_16 = arith.constant 0 : index
      %c1 = arith.constant 1 : index
      %c0_17 = arith.constant 0 : index
      %22 = vector.load %arg4[%c0_16, %c1, %c0_17] : memref<1x2x256xf32, #tpu.memory_space<vmem>>, vector<1x1x256xf32>
      %23 = vector.shape_cast %22 : vector<1x1x256xf32> to vector<1x256xf32>
      %24 = vector.shape_cast %21 : vector<1x256xf32> to vector<1x1x256xf32>
      tpu.vector_store %arg4[%c0_16, %c1, %c0_17], %24 {strides = array<i32>} : memref<1x2x256xf32, #tpu.memory_space<vmem>>, vector<1x1x256xf32>,
    } else {
    }
    return
  }
  func.func @transform_0(%arg0: i32, %arg1: i32, %arg2: i32) -> (i32, i32, i32) {
    %c0_i32 = arith.constant 0 : i32
    return %arg0, %arg2, %arg1 : i32, i32, i32
  }
  func.func @transform_1(%arg0: i32, %arg1: i32, %arg2: i32) -> (i32, i32, i32) {
    %c0_i32 = arith.constant 0 : i32
    %c0_i32_0 = arith.constant 0 : i32
    return %arg0, %c0_i32, %arg1 : i32, i32, i32
  }
}

module attributes {stable_mosaic.version = 11 : i64} {
  func.func @_conv_sigmoid_kernel(%arg0: i32, %arg1: memref<1xf32, #tpu.memory_space<smem>>, %arg2: memref<7x32x16xf32, #tpu.memory_space<vmem>>, %arg3: memref<1x22x32xf32, #tpu.memory_space<vmem>>, %arg4: memref<1x1x16x16xf32, #tpu.memory_space<vmem>>) attributes {dimension_semantics = [#tpu.dimension_semantics<parallel>], iteration_bounds = array<i64: 2>, scalar_prefetch = 0 : i64, scratch_operands = 0 : i64, tpu.core_type = #tpu.core_type<tc>, window_params = [{transform_indices = @transform_0, window_bounds = array<i64: 1>}, {pipeline_mode = #tpu.pipeline_mode<synchronous>, transform_indices = @transform_1, window_bounds = array<i64: 7, 32, 16>}, {transform_indices = @transform_2, window_bounds = array<i64: 1, 22, 32>}, {transform_indices = @transform_3, window_bounds = array<i64: 1, 1, 16, 16>}]} {
    %c0 = arith.constant 0 : index
    %c0_0 = arith.constant 0 : index
    %c0_1 = arith.constant 0 : index
    %0 = vector.load %arg3[%c0, %c0_0, %c0_1] : memref<1x22x32xf32, #tpu.memory_space<vmem>>, vector<1x22x32xf32>
    %1 = vector.shape_cast %0 : vector<1x22x32xf32> to vector<22x32xf32>
    %2 = vector.extract_strided_slice %1 {offsets = [0, 0], sizes = [16, 32], strides = [1, 1]} : vector<22x32xf32> to vector<16x32xf32>
    %c0_2 = arith.constant 0 : index
    %c0_3 = arith.constant 0 : index
    %c0_4 = arith.constant 0 : index
    %3 = vector.load %arg2[%c0_2, %c0_3, %c0_4] : memref<7x32x16xf32, #tpu.memory_space<vmem>>, vector<1x32x16xf32>
    %4 = vector.shape_cast %3 : vector<1x32x16xf32> to vector<32x16xf32>
    %cst = arith.constant dense<0.000000e+00> : vector<16x16xf32>
    %5 = tpu.matmul %2, %4, %cst {dimension_numbers = #tpu.dot_dimension_numbers<[1], [0], [0], [1], [0, 0, 1, 1], [], []>} : vector<16x32xf32>, vector<32x16xf32>, vector<16x16xf32> -> vector<16x16xf32>
    %6 = vector.extract_strided_slice %1 {offsets = [1, 0], sizes = [16, 32], strides = [1, 1]} : vector<22x32xf32> to vector<16x32xf32>
    %c1 = arith.constant 1 : index
    %c0_5 = arith.constant 0 : index
    %c0_6 = arith.constant 0 : index
    %7 = vector.load %arg2[%c1, %c0_5, %c0_6] : memref<7x32x16xf32, #tpu.memory_space<vmem>>, vector<1x32x16xf32>
    %8 = vector.shape_cast %7 : vector<1x32x16xf32> to vector<32x16xf32>
    %cst_7 = arith.constant dense<0.000000e+00> : vector<16x16xf32>
    %9 = tpu.matmul %6, %8, %cst_7 {dimension_numbers = #tpu.dot_dimension_numbers<[1], [0], [0], [1], [0, 0, 1, 1], [], []>} : vector<16x32xf32>, vector<32x16xf32>, vector<16x16xf32> -> vector<16x16xf32>
    %10 = vector.extract_strided_slice %1 {offsets = [2, 0], sizes = [16, 32], strides = [1, 1]} : vector<22x32xf32> to vector<16x32xf32>
    %c2 = arith.constant 2 : index
    %c0_8 = arith.constant 0 : index
    %c0_9 = arith.constant 0 : index
    %11 = vector.load %arg2[%c2, %c0_8, %c0_9] : memref<7x32x16xf32, #tpu.memory_space<vmem>>, vector<1x32x16xf32>
    %12 = vector.shape_cast %11 : vector<1x32x16xf32> to vector<32x16xf32>
    %cst_10 = arith.constant dense<0.000000e+00> : vector<16x16xf32>
    %13 = tpu.matmul %10, %12, %cst_10 {dimension_numbers = #tpu.dot_dimension_numbers<[1], [0], [0], [1], [0, 0, 1, 1], [], []>} : vector<16x32xf32>, vector<32x16xf32>, vector<16x16xf32> -> vector<16x16xf32>
    %14 = arith.addf %5, %13 : vector<16x16xf32>
    %15 = vector.extract_strided_slice %1 {offsets = [3, 0], sizes = [16, 32], strides = [1, 1]} : vector<22x32xf32> to vector<16x32xf32>
    %c3 = arith.constant 3 : index
    %c0_11 = arith.constant 0 : index
    %c0_12 = arith.constant 0 : index
    %16 = vector.load %arg2[%c3, %c0_11, %c0_12] : memref<7x32x16xf32, #tpu.memory_space<vmem>>, vector<1x32x16xf32>
    %17 = vector.shape_cast %16 : vector<1x32x16xf32> to vector<32x16xf32>
    %cst_13 = arith.constant dense<0.000000e+00> : vector<16x16xf32>
    %18 = tpu.matmul %15, %17, %cst_13 {dimension_numbers = #tpu.dot_dimension_numbers<[1], [0], [0], [1], [0, 0, 1, 1], [], []>} : vector<16x32xf32>, vector<32x16xf32>, vector<16x16xf32> -> vector<16x16xf32>
    %19 = arith.addf %9, %18 : vector<16x16xf32>
    %20 = vector.extract_strided_slice %1 {offsets = [4, 0], sizes = [16, 32], strides = [1, 1]} : vector<22x32xf32> to vector<16x32xf32>
    %c4 = arith.constant 4 : index
    %c0_14 = arith.constant 0 : index
    %c0_15 = arith.constant 0 : index
    %21 = vector.load %arg2[%c4, %c0_14, %c0_15] : memref<7x32x16xf32, #tpu.memory_space<vmem>>, vector<1x32x16xf32>
    %22 = vector.shape_cast %21 : vector<1x32x16xf32> to vector<32x16xf32>
    %cst_16 = arith.constant dense<0.000000e+00> : vector<16x16xf32>
    %23 = tpu.matmul %20, %22, %cst_16 {dimension_numbers = #tpu.dot_dimension_numbers<[1], [0], [0], [1], [0, 0, 1, 1], [], []>} : vector<16x32xf32>, vector<32x16xf32>, vector<16x16xf32> -> vector<16x16xf32>
    %24 = arith.addf %14, %23 : vector<16x16xf32>
    %25 = vector.extract_strided_slice %1 {offsets = [5, 0], sizes = [16, 32], strides = [1, 1]} : vector<22x32xf32> to vector<16x32xf32>
    %c5 = arith.constant 5 : index
    %c0_17 = arith.constant 0 : index
    %c0_18 = arith.constant 0 : index
    %26 = vector.load %arg2[%c5, %c0_17, %c0_18] : memref<7x32x16xf32, #tpu.memory_space<vmem>>, vector<1x32x16xf32>
    %27 = vector.shape_cast %26 : vector<1x32x16xf32> to vector<32x16xf32>
    %cst_19 = arith.constant dense<0.000000e+00> : vector<16x16xf32>
    %28 = tpu.matmul %25, %27, %cst_19 {dimension_numbers = #tpu.dot_dimension_numbers<[1], [0], [0], [1], [0, 0, 1, 1], [], []>} : vector<16x32xf32>, vector<32x16xf32>, vector<16x16xf32> -> vector<16x16xf32>
    %29 = arith.addf %19, %28 : vector<16x16xf32>
    %30 = vector.extract_strided_slice %1 {offsets = [6, 0], sizes = [16, 32], strides = [1, 1]} : vector<22x32xf32> to vector<16x32xf32>
    %c6 = arith.constant 6 : index
    %c0_20 = arith.constant 0 : index
    %c0_21 = arith.constant 0 : index
    %31 = vector.load %arg2[%c6, %c0_20, %c0_21] : memref<7x32x16xf32, #tpu.memory_space<vmem>>, vector<1x32x16xf32>
    %32 = vector.shape_cast %31 : vector<1x32x16xf32> to vector<32x16xf32>
    %cst_22 = arith.constant dense<0.000000e+00> : vector<16x16xf32>
    %33 = tpu.matmul %30, %32, %cst_22 {dimension_numbers = #tpu.dot_dimension_numbers<[1], [0], [0], [1], [0, 0, 1, 1], [], []>} : vector<16x32xf32>, vector<32x16xf32>, vector<16x16xf32> -> vector<16x16xf32>
    %34 = arith.addf %24, %33 : vector<16x16xf32>
    %35 = arith.addf %34, %29 : vector<16x16xf32>
    %c0_23 = arith.constant 0 : index
    %36 = memref.load %arg1[%c0_23] : memref<1xf32, #tpu.memory_space<smem>>
    %37 = vector.broadcast %36 : f32 to vector<16x16xf32>
    %38 = arith.addf %35, %37 : vector<16x16xf32>
    %39 = arith.negf %38 : vector<16x16xf32>
    %40 = math.exp %39 : vector<16x16xf32>
    %cst_24 = arith.constant 1.000000e+00 : f32
    %41 = vector.broadcast %cst_24 : f32 to vector<16x16xf32>
    %42 = arith.addf %41, %40 : vector<16x16xf32>
    %43 = arith.divf %41, %42 : vector<16x16xf32>
    %c0_25 = arith.constant 0 : index
    %c0_26 = arith.constant 0 : index
    %c0_27 = arith.constant 0 : index
    %c0_28 = arith.constant 0 : index
    %44 = vector.load %arg4[%c0_25, %c0_26, %c0_27, %c0_28] : memref<1x1x16x16xf32, #tpu.memory_space<vmem>>, vector<1x1x16x16xf32>
    %45 = vector.shape_cast %44 : vector<1x1x16x16xf32> to vector<16x16xf32>
    %46 = vector.shape_cast %43 : vector<16x16xf32> to vector<1x1x16x16xf32>
    tpu.vector_store %arg4[%c0_25, %c0_26, %c0_27, %c0_28], %46 {strides = array<i32>} : memref<1x1x16x16xf32, #tpu.memory_space<vmem>>, vector<1x1x16x16xf32>,
    return
  }
  func.func @transform_0(%arg0: i32) -> i32 {
    %c0_i32 = arith.constant 0 : i32
    %c0_i32_0 = arith.constant 0 : i32
    return %c0_i32 : i32
  }
  func.func @transform_1(%arg0: i32) -> (i32, i32, i32) {
    %c0_i32 = arith.constant 0 : i32
    %c0_i32_0 = arith.constant 0 : i32
    %c0_i32_1 = arith.constant 0 : i32
    %c0_i32_2 = arith.constant 0 : i32
    return %c0_i32, %c0_i32_0, %c0_i32_1 : i32, i32, i32
  }
  func.func @transform_2(%arg0: i32) -> (i32, i32, i32) {
    %c0_i32 = arith.constant 0 : i32
    %c0_i32_0 = arith.constant 0 : i32
    %c0_i32_1 = arith.constant 0 : i32
    return %arg0, %c0_i32, %c0_i32_0 : i32, i32, i32
  }
  func.func @transform_3(%arg0: i32) -> (i32, i32, i32, i32) {
    %c0_i32 = arith.constant 0 : i32
    %c0_i32_0 = arith.constant 0 : i32
    %c0_i32_1 = arith.constant 0 : i32
    %c0_i32_2 = arith.constant 0 : i32
    return %arg0, %c0_i32, %c0_i32_0, %c0_i32_1 : i32, i32, i32, i32
  }
}

</mosaic_0001>

<llo_original>
// kernel: spatial_attention.2
$region0: #{spatial_attention.2}
  #allocation0 [shape = 'u32[]', space=smem, size = 0x4, offset = 0x4, fixed_abs, tag = 'smem constant byte address 0x4 - core index']
  #allocation1 [shape = 'u32[144,128]{1,0:T(1,128)}', space=vmem, size = 0x12000, scoped, tag = 'internal scratch']
  #allocation2 [shape = 'f32[1,256]{1,0:T(1,128)}', space=vmem, size = 0x400, scoped, tag = 'scratch operand']
  #allocation3 [shape = 'f32[1,256]{1,0:T(1,128)}', space=vmem, size = 0x400, scoped, tag = 'scratch operand']
  %s0 = inlined_call_operand.vmem [shape: f32[2,4,256], index: 0, kind: input, shape index: {}]
  %s1 = inlined_call_operand.vmem [shape: f32[2,2,256], index: 1, kind: output, shape index: {}]
  %s2 = sld [smem:[#allocation0]]
  $region49: #{spatial_attention.2} parent=0
    _
  %s4 = ssub.s32 1, %s2
  %s5 = scalar_select 0, %s4, %s2
  loop: start=0, step=1, limit=4
  $region2: #{spatial_attention.2} parent=0 // loop_pre_header
    _
  $region3: #{spatial_attention.2} parent=0 // loop_header
    %s7 = sphi 0, %s11
    %p8 = scmp.ge.s32.totalorder %s7, 4
    %s14 = sphi 0, %s33
    %s15 = sphi 0, %s29
    %s16 = sphi 0, %s25
    %s17 = sphi 0, %s14
    %s18 = sphi 0, %s15
    %s19 = sphi 0, %s16
    %s20 = sphi 0, %s17
    %s21 = sphi 0, %s18
    %s22 = sphi 0, %s19
    %s40 = sphi 0, %s42
    %s43 = sphi 0, %s40
    %s44 = sphi 0, %s43
    %s60 = sphi 0, %s44
    %s68 = sphi 0, %s70
    %s71 = sphi 0, %s68
    %s72 = sphi 0, %s71
    %s88 = sphi 0, %s72
  $region4: #{spatial_attention.2} parent=0 // loop_header_branch
    %10 = sbr.rel (%p8) target = $region8
  $region5: #{spatial_attention.2} parent=0 // loop_body
    %s12 = ssub.s32 %s7, 1
    %s13 = ssub.s32 %s7, 2
    %s23 = sadd.s32 1, %s16
    %p24 = scmp.ge.s32.totalorder %s23, 1
    %s25 = scalar_select %p24, 0, %s23
    %s26 = sadd.s32 1, %s15
    %s27 = scalar_select %p24, %s26, %s15
    %p28 = scmp.ge.s32.totalorder %s27, 1
    %s29 = scalar_select %p28, 0, %s27
    %s30 = sadd.s32 1, %s14
    %s31 = scalar_select %p28, %s30, %s14
    %p32 = scmp.ge.s32.totalorder %s31, 2
    %s33 = scalar_select %p32, 0, %s31
    %s34 = ssub.s32 %s14, %s33
    %s35 = ssub.s32 %s16, %s25
    %s36 = sor.u32 %s34, %s35
    %s37 = ssub.s32 %s15, %s29
    %s38 = sor.u32 %s36, %s37
    %p39 = scmp.eq.s32.totalorder %s38, 0
    %s41 = sadd.s32 %s40, 1
    %s42 = scalar_select %p39, %s40, %s41
    %p45 = pneg %p39
    %p46 = scmp.eq.s32.totalorder %s7, 1
    %p47 = por %p45, %p46
    %p48 = scmp.ne.s32.totalorder %s40, %s43
    %p49 = scmp.eq.s32.totalorder %s7, 0
    %p50 = por %p48, %p49
    %p51 = scmp.ne.s32.totalorder %s40, %s43
    %p52 = scmp.eq.s32.totalorder %s12, 1
    %p53 = por %p51, %p52
    %p54 = scmp.ne.s32.totalorder %s43, %s44
    %p55 = scmp.eq.s32.totalorder %s12, 0
    %p56 = por %p54, %p55
    %p57 = scmp.ne.s32.totalorder %s43, %s44
    %p58 = scmp.eq.s32.totalorder %s13, 1
    %p59 = por %p57, %p58
    %p61 = scmp.ne.s32.totalorder %s44, %s60
    %p62 = scmp.eq.s32.totalorder %s13, 0
    %p63 = por %p61, %p62
    %s64 = ssub.s32 %s14, %s33
    %s65 = ssub.s32 %s15, %s29
    %s66 = sor.u32 %s64, %s65
    %p67 = scmp.eq.s32.totalorder %s66, 0
    %s69 = sadd.s32 %s68, 1
    %s70 = scalar_select %p67, %s68, %s69
    %p73 = pneg %p67
    %p74 = scmp.eq.s32.totalorder %s7, 1
    %p75 = por %p73, %p74
    %p76 = scmp.ne.s32.totalorder %s68, %s71
    %p77 = scmp.eq.s32.totalorder %s7, 0
    %p78 = por %p76, %p77
    %p79 = scmp.ne.s32.totalorder %s68, %s71
    %p80 = scmp.eq.s32.totalorder %s12, 1
    %p81 = por %p79, %p80
    %p82 = scmp.ne.s32.totalorder %s71, %s72
    %p83 = scmp.eq.s32.totalorder %s12, 0
    %p84 = por %p82, %p83
    %p85 = scmp.ne.s32.totalorder %s71, %s72
    %p86 = scmp.eq.s32.totalorder %s13, 1
    %p87 = por %p85, %p86
    %p89 = scmp.ne.s32.totalorder %s72, %s88
    %p90 = scmp.eq.s32.totalorder %s13, 0
    %p91 = por %p89, %p90
    %p92 = scmp.le.s32.totalorder 1, %s7
    %p93 = scmp.lt.s32.totalorder %s7, 3
    %p94 = pnand %p92, %p93
    %p95 = pneg %p94
    // Predicated region
    $region9: #{spatial_attention.2} parent=5 // pred_check
      _
    $region10: #{spatial_attention.2} parent=5 // pred_check_branch
      %97 = sbr.rel (%p94) target = $region12
    $region11: #{spatial_attention.2} parent=5 // pred_region
      %s98 = ssub.s32 %s7, 1
    $region12: #{spatial_attention.2} parent=5 // pred_fallthru
      _
    %p99 = scmp.lt.s32.totalorder %s7, 2
    // Predicated region
    $region13: #{spatial_attention.2} parent=5 // pred_check
      %p100 = pneg %p99
    $region14: #{spatial_attention.2} parent=5 // pred_check_branch
      %102 = sbr.rel (%p100) target = $region16
    $region15: #{spatial_attention.2} parent=5 // pred_region
      // Predicated region
      $region17: #{spatial_attention.2} parent=15 // pred_check
        %p103 = pneg %p50
      $region18: #{spatial_attention.2} parent=15 // pred_check_branch
        %105 = sbr.rel (%p103) target = $region20
      $region19: #{spatial_attention.2} parent=15 // pred_region
        %s106 = smul.u32 2, %s15
        %p107 = scmp.lt.s32.totalorder %s14, 1
        %s108 = scalar_select %p107, %s14, 1
        %p109 = scmp.lt.s32.totalorder %s16, 0
        %s110 = scalar_select %p109, %s16, 0
        %p111 = scmp.lt.s32.totalorder %s106, 1
        %s112 = scalar_select %p111, %s106, 1
        %s113 = smul.addr %s110, 2
        %s114 = sadd.s32 %s112, %s113
        %s115 = smul.addr %s108, 2
        %s116 = sadd.s32 %s114, %s115
        %s117 = smul.addr %s116, 4
        %s118 = scalar_lea.vmem %s0, %s117
        %s119 = smul.u32 2, %s15
      $region20: #{spatial_attention.2} parent=15 // pred_fallthru
        _
    $region16: #{spatial_attention.2} parent=5 // pred_fallthru
      _
    %p120 = scmp.le.s32.totalorder 1, %s7
    %p121 = scmp.lt.s32.totalorder %s7, 3
    %p122 = pnand %p120, %p121
    %p123 = pneg %p122
    // Predicated region
    $region21: #{spatial_attention.2} parent=5 // pred_check
      _
    $region22: #{spatial_attention.2} parent=5 // pred_check_branch
      %125 = sbr.rel (%p122) target = $region24
    $region23: #{spatial_attention.2} parent=5 // pred_region
      %s126 = ssub.s32 %s7, 1
      %s127 = smul.u32 2, %s18
      %p128 = scmp.lt.s32.totalorder %s17, 1
      %s129 = scalar_select %p128, %s17, 1
      %p130 = scmp.lt.s32.totalorder %s19, 0
      %s131 = scalar_select %p130, %s19, 0
      %p132 = scmp.lt.s32.totalorder %s127, 1
      %s133 = scalar_select %p132, %s127, 1
      %s134 = smul.addr %s131, 2
      %s135 = sadd.s32 %s133, %s134
      %s136 = smul.addr %s129, 2
      %s137 = sadd.s32 %s135, %s136
      %s138 = smul.addr %s137, 4
      %s139 = scalar_lea.vmem %s0, %s138
      %p140 = pneg %p56
      %p141 = pneg %p53
      %p142 = pneg %p84
      %p143 = pneg %p81
      %s144 = smul.u32 2, %s18
      %p145 = scmp.lt.s32.totalorder %s17, 1
      %s146 = scalar_select %p145, %s17, 1
      %p147 = scmp.lt.s32.totalorder %s144, 1
      %s148 = scalar_select %p147, %s144, 1
      %s149 = smul.addr %s146, 2
      %s150 = sadd.s32 %s148, %s149
      %s151 = smul.addr %s150, 2
      %s152 = scalar_lea.vmem %s1, %s151
      %s153 = smul.u32 2, %s18
      %p154 = scmp.lt.s32.totalorder %s17, 1
      %s155 = scalar_select %p154, %s17, 1
      %p156 = scmp.lt.s32.totalorder %s19, 0
      %s157 = scalar_select %p156, %s19, 0
      %p158 = scmp.lt.s32.totalorder %s153, 1
      %s159 = scalar_select %p158, %s153, 1
      %s160 = smul.addr %s157, 2
      %s161 = sadd.s32 %s159, %s160
      %s162 = smul.addr %s155, 2
      %s163 = sadd.s32 %s161, %s162
      %s164 = smul.addr %s163, 4
      %s165 = scalar_lea.vmem %s0, %s164
      %s166 = smul.u32 2, %s18
      %s167 = smul.u32 2, %s18
      %p168 = scmp.lt.s32.totalorder %s17, 1
      %s169 = scalar_select %p168, %s17, 1
      %p170 = scmp.lt.s32.totalorder %s167, 1
      %s171 = scalar_select %p170, %s167, 1
      %s172 = smul.addr %s169, 2
      %s173 = sadd.s32 %s171, %s172
      %s174 = smul.addr %s173, 2
      %s175 = scalar_lea.vmem %s1, %s174
      %s176 = smul.u32 2, %s18
      %v177 = vld [vmem:[%s165] sm:$0xff]
      %v179 = vcombine.high %v177, %v177
      %vm181 = vcmask 1043456
      %v182 = vsel %vm181, %v177, 0.0
      %v183 = vrot.slane %v182, 4
      %v184 = vadd.f32 %v182, %v183
      %v185 = vrot.slane %v184, 2
      %v186 = vadd.f32 %v184, %v185
      %v187 = vrot.slane %v186, 1
      %v188 = vadd.f32 %v186, %v187
      %v189 = vsel %vm181, %v179, 0.0
      %v190 = vrot.slane %v189, 4
      %v191 = vadd.f32 %v189, %v190
      %v192 = vrot.slane %v191, 2
      %v193 = vadd.f32 %v191, %v192
      %v194 = vrot.slane %v193, 1
      %v195 = vadd.f32 %v193, %v194
      %v196 = vsel %vm181, %v177, -inf
      %v197 = vrot.slane %v196, 4
      %v198 = vmax.f32 %v196, %v197
      %v199 = vrot.slane %v198, 2
      %v200 = vmax.f32 %v198, %v199
      %v201 = vrot.slane %v200, 1
      %v202 = vmax.f32 %v200, %v201
      %v203 = vsel %vm181, %v179, -inf
      %v204 = vrot.slane %v203, 4
      %v205 = vmax.f32 %v203, %v204
      %v206 = vrot.slane %v205, 2
      %v207 = vmax.f32 %v205, %v206
      %v208 = vrot.slane %v207, 1
      %v209 = vmax.f32 %v207, %v208
      %p210 = scmp.eq.s32.totalorder %s19, 0
      // Predicated region
      $region25: #{spatial_attention.2} parent=23 // pred_check
        %p211 = pneg %p210
      $region26: #{spatial_attention.2} parent=23 // pred_check_branch
        %213 = sbr.rel (%p211) target = $region28
      $region27: #{spatial_attention.2} parent=23 // pred_region
        %v216 = vcombine.low %v188, %v195
        %v218 = vunpack.c.l.s4 1966171168
        %v219 = vunpack.c.0.s8 %v218
        %v220 = vlaneseq
        %v221 = vshrl.u32 %v220, 7
        %v222 = vsub.s32 %v219, %v221
        %v223 = vrot.slane %v216, %v222
        %v225 = vunpack.c.l.s4 1966171168
        %v226 = vunpack.c.0.s8 %v225
        %v227 = vlaneseq
        %v228 = vshrl.u32 %v227, 7
        %v229 = vsub.s32 %v226, %v228
        %v230 = vrot.slane %v223, %v229
        %v232 = vlaneseq
        %vm233 = vcmp.ge.s32.totalorder %v232, 0
        %vm234 = vcmp.lt.s32.totalorder %v232, 256
        %vm235 = vmand %vm233, %vm234
        %236 = vst.msk [vmem:[#allocation2] sm:$0x3] %vm235, %v230
        %v239 = vcombine.low %v202, %v209
        %v241 = vunpack.c.l.s4 1966171168
        %v242 = vunpack.c.0.s8 %v241
        %v243 = vlaneseq
        %v244 = vshrl.u32 %v243, 7
        %v245 = vsub.s32 %v242, %v244
        %v246 = vrot.slane %v239, %v245
        %v248 = vunpack.c.l.s4 1966171168
        %v249 = vunpack.c.0.s8 %v248
        %v250 = vlaneseq
        %v251 = vshrl.u32 %v250, 7
        %v252 = vsub.s32 %v249, %v251
        %v253 = vrot.slane %v246, %v252
        %255 = vst.msk [vmem:[#allocation3] sm:$0x3] %vm235, %v253
      $region28: #{spatial_attention.2} parent=23 // pred_fallthru
        _
      %p256 = scmp.gt.s32.totalorder %s19, 0
      // Predicated region
      $region29: #{spatial_attention.2} parent=23 // pred_check
        %p257 = pneg %p256
      $region30: #{spatial_attention.2} parent=23 // pred_check_branch
        %259 = sbr.rel (%p257) target = $region32
      $region31: #{spatial_attention.2} parent=23 // pred_region
        %v260 = vld [vmem:[#allocation2] sm:$0x3]
        %v263 = vcombine.low %v188, %v195
        %v265 = vunpack.c.l.s4 1966171168
        %v266 = vunpack.c.0.s8 %v265
        %v267 = vlaneseq
        %v268 = vshrl.u32 %v267, 7
        %v269 = vsub.s32 %v266, %v268
        %v270 = vrot.slane %v263, %v269
        %v272 = vunpack.c.l.s4 1966171168
        %v273 = vunpack.c.0.s8 %v272
        %v274 = vlaneseq
        %v275 = vshrl.u32 %v274, 7
        %v276 = vsub.s32 %v273, %v275
        %v277 = vrot.slane %v270, %v276
        %v279 = vadd.f32 %v260, %v277
        %v280 = vlaneseq
        %vm281 = vcmp.ge.s32.totalorder %v280, 0
        %vm282 = vcmp.lt.s32.totalorder %v280, 256
        %vm283 = vmand %vm281, %vm282
        %284 = vst.msk [vmem:[#allocation2] sm:$0x3] %vm283, %v279
        %v285 = vld [vmem:[#allocation3] sm:$0x3]
        %v288 = vcombine.low %v202, %v209
        %v290 = vunpack.c.l.s4 1966171168
        %v291 = vunpack.c.0.s8 %v290
        %v292 = vlaneseq
        %v293 = vshrl.u32 %v292, 7
        %v294 = vsub.s32 %v291, %v293
        %v295 = vrot.slane %v288, %v294
        %v297 = vunpack.c.l.s4 1966171168
        %v298 = vunpack.c.0.s8 %v297
        %v299 = vlaneseq
        %v300 = vshrl.u32 %v299, 7
        %v301 = vsub.s32 %v298, %v300
        %v302 = vrot.slane %v295, %v301
        %v304 = vmax.f32 %v285, %v302
        %305 = vst.msk [vmem:[#allocation3] sm:$0x3] %vm283, %v304
      $region32: #{spatial_attention.2} parent=23 // pred_fallthru
        _
      // Predicated region
      $region33: #{spatial_attention.2} parent=23 // pred_check
        %p306 = pneg %p210
      $region34: #{spatial_attention.2} parent=23 // pred_check_branch
        %308 = sbr.rel (%p306) target = $region36
      $region35: #{spatial_attention.2} parent=23 // pred_region
        %v309 = vld [vmem:[#allocation2] sm:$0x3]
        %v310 = vmul.f32 %v309, 0.25
        %v311 = vlaneseq
        %vm312 = vcmp.ge.s32.totalorder %v311, 0
        %vm313 = vcmp.lt.s32.totalorder %v311, 256
        %vm314 = vmand %vm312, %vm313
        %315 = vst.msk [vmem:[%s175] ss:$2 sm:$0x3] %vm314, %v310
        %v316 = vld [vmem:[#allocation3] sm:$0x3]
        %s317 = scalar_lea.vmem %s175, 1
        %318 = vst.msk [vmem:[%s317] ss:$2 sm:$0x3] %vm314, %v316
      $region36: #{spatial_attention.2} parent=23 // pred_fallthru
        _
      %s319 = smul.u32 2, %s18
      %p320 = scmp.lt.s32.totalorder %s17, 1
      %s321 = scalar_select %p320, %s17, 1
      %p322 = scmp.lt.s32.totalorder %s319, 1
      %s323 = scalar_select %p322, %s319, 1
      %s324 = smul.addr %s321, 2
      %s325 = sadd.s32 %s323, %s324
      %s326 = smul.addr %s325, 2
      %s327 = scalar_lea.vmem %s1, %s326
      // Predicated region
      $region37: #{spatial_attention.2} parent=23 // pred_check
        %p328 = pneg %p81
      $region38: #{spatial_attention.2} parent=23 // pred_check_branch
        %330 = sbr.rel (%p328) target = $region40
      $region39: #{spatial_attention.2} parent=23 // pred_region
        %s331 = smul.u32 2, %s18
      $region40: #{spatial_attention.2} parent=23 // pred_fallthru
        _
    $region24: #{spatial_attention.2} parent=5 // pred_fallthru
      _
    %p332 = scmp.le.s32.totalorder 2, %s7
    // Predicated region
    $region41: #{spatial_attention.2} parent=5 // pred_check
      %p333 = pneg %p332
    $region42: #{spatial_attention.2} parent=5 // pred_check_branch
      %335 = sbr.rel (%p333) target = $region44
    $region43: #{spatial_attention.2} parent=5 // pred_region
      %s336 = ssub.s32 %s7, 2
      // Predicated region
      $region45: #{spatial_attention.2} parent=43 // pred_check
        %p337 = pneg %p87
      $region46: #{spatial_attention.2} parent=43 // pred_check_branch
        %339 = sbr.rel (%p337) target = $region48
      $region47: #{spatial_attention.2} parent=43 // pred_region
        %s340 = smul.u32 2, %s21
        %p341 = scmp.lt.s32.totalorder %s20, 1
        %s342 = scalar_select %p341, %s20, 1
        %p343 = scmp.lt.s32.totalorder %s340, 1
        %s344 = scalar_select %p343, %s340, 1
        %s345 = smul.addr %s342, 2
        %s346 = sadd.s32 %s344, %s345
        %s347 = smul.addr %s346, 2
        %s348 = scalar_lea.vmem %s1, %s347
      $region48: #{spatial_attention.2} parent=43 // pred_fallthru
        _
    $region44: #{spatial_attention.2} parent=5 // pred_fallthru
      _
  $region6: #{spatial_attention.2} parent=0 // loop_footer
    %s11 = sadd.s32 1, %s7
  $region7: #{spatial_attention.2} parent=0 // loop_footer_branch
    %6 = sbr.rel target = $region3
  $region8: #{spatial_attention.2} parent=0 // loop_exit
    _

// kernel: spatial_attention.3
$region0: #{spatial_attention.3}
  #allocation0 [shape = 'u32[]', space=smem, size = 0x4, offset = 0x4, fixed_abs, tag = 'smem constant byte address 0x4 - core index']
  #allocation1 [shape = 'u32[144,128]{1,0:T(1,128)}', space=vmem, size = 0x12000, scoped, tag = 'internal scratch']
  #allocation2 [shape = 'f32[1]{0:T(128)S(6)}', space=smem, size = 0x200, scoped, tag = 'scoped memory for spatial_attention.3']
  %s0 = inlined_call_operand.<no memory space> [shape: f32[1], index: 0, kind: input, shape index: {}]
  %s1 = inlined_call_operand.vmem [shape: f32[7,32,16], index: 1, kind: input, shape index: {}]
  %s2 = inlined_call_operand.vmem [shape: f32[2,22,32], index: 2, kind: input, shape index: {}]
  %s3 = inlined_call_operand.hbm [shape: f32[2,1,16,16], index: 3, kind: output, shape index: {}]
  %s4 = sld [smem:[#allocation0]]
  $region45: #{spatial_attention.3} parent=0
    _
  %s6 = ssub.s32 1, %s4
  %s7 = scalar_select 0, %s6, %s4
  %8 = sst [smem:[#allocation2]] %s0
  $region1: #{spatial_attention.3} parent=0
    #allocation3 [shape = 'u8[16384]{0}', space=vmem, size = 0x4000, scoped, tag = 'output window, operand 0']
    #allocation4 [shape = 's32[2]{0}', space=sflag, size = 0x8, scoped, tag = 'scoped memory for spatial_attention.3']
    %9 = vsyncpa [#allocation4], 0
    %s10 = scalar_lea.sflag [#allocation4], 1
    %11 = vsyncpa %s10, 0
    loop: start=0, step=1, limit=4
    $region2: #{spatial_attention.3} parent=1 // loop_pre_header
      _
    $region3: #{spatial_attention.3} parent=1 // loop_header
      %s13 = sphi 0, %s17
      %p14 = scmp.ge.s32.totalorder %s13, 4
      %s21 = sphi 0, %s21
      %s23 = sphi 0, %s21
      %s24 = sphi 0, %s23
      %s38 = sphi 0, %s24
      %s42 = sphi 0, %s42
      %s44 = sphi 0, %s42
      %s45 = sphi 0, %s44
      %s59 = sphi 0, %s45
      %s65 = sphi 0, %s67
      %s68 = sphi 0, %s65
      %s69 = sphi 0, %s68
      %s85 = sphi 0, %s69
      %s91 = sphi 0, %s93
      %s94 = sphi 0, %s91
      %s95 = sphi 0, %s94
      %s111 = sphi 0, %s95
    $region4: #{spatial_attention.3} parent=1 // loop_header_branch
      %16 = sbr.rel (%p14) target = $region8
    $region5: #{spatial_attention.3} parent=1 // loop_body
      %s18 = ssub.s32 %s13, 1
      %s19 = ssub.s32 %s13, 2
      %s20 = sadd.s32 %s13, 1
      %s22 = sadd.s32 %s21, 1
      %p25 = scmp.eq.s32.totalorder %s13, 1
      %p26 = scmp.ne.s32.totalorder %s21, %s23
      %p27 = scmp.eq.s32.totalorder %s13, 0
      %p28 = por %p26, %p27
      %p29 = scmp.ne.s32.totalorder %s21, %s23
      %p30 = scmp.eq.s32.totalorder %s18, 1
      %p31 = por %p29, %p30
      %p32 = scmp.ne.s32.totalorder %s23, %s24
      %p33 = scmp.eq.s32.totalorder %s18, 0
      %p34 = por %p32, %p33
      %p35 = scmp.ne.s32.totalorder %s23, %s24
      %p36 = scmp.eq.s32.totalorder %s19, 1
      %p37 = por %p35, %p36
      %p39 = scmp.ne.s32.totalorder %s24, %s38
      %p40 = scmp.eq.s32.totalorder %s19, 0
      %p41 = por %p39, %p40
      %s43 = sadd.s32 %s42, 1
      %p46 = scmp.eq.s32.totalorder %s13, 1
      %p47 = scmp.ne.s32.totalorder %s42, %s44
      %p48 = scmp.eq.s32.totalorder %s13, 0
      %p49 = por %p47, %p48
      %p50 = scmp.ne.s32.totalorder %s42, %s44
      %p51 = scmp.eq.s32.totalorder %s18, 1
      %p52 = por %p50, %p51
      %p53 = scmp.ne.s32.totalorder %s44, %s45
      %p54 = scmp.eq.s32.totalorder %s18, 0
      %p55 = por %p53, %p54
      %p56 = scmp.ne.s32.totalorder %s44, %s45
      %p57 = scmp.eq.s32.totalorder %s19, 1
      %p58 = por %p56, %p57
      %p60 = scmp.ne.s32.totalorder %s45, %s59
      %p61 = scmp.eq.s32.totalorder %s19, 0
      %p62 = por %p60, %p61
      %s63 = ssub.s32 %s13, %s20
      %p64 = scmp.eq.s32.totalorder %s63, 0
      %s66 = sadd.s32 %s65, 1
      %s67 = scalar_select %p64, %s65, %s66
      %p70 = pneg %p64
      %p71 = scmp.eq.s32.totalorder %s13, 1
      %p72 = por %p70, %p71
      %p73 = scmp.ne.s32.totalorder %s65, %s68
      %p74 = scmp.eq.s32.totalorder %s13, 0
      %p75 = por %p73, %p74
      %p76 = scmp.ne.s32.totalorder %s65, %s68
      %p77 = scmp.eq.s32.totalorder %s18, 1
      %p78 = por %p76, %p77
      %p79 = scmp.ne.s32.totalorder %s68, %s69
      %p80 = scmp.eq.s32.totalorder %s18, 0
      %p81 = por %p79, %p80
      %p82 = scmp.ne.s32.totalorder %s68, %s69
      %p83 = scmp.eq.s32.totalorder %s19, 1
      %p84 = por %p82, %p83
      %p86 = scmp.ne.s32.totalorder %s69, %s85
      %p87 = scmp.eq.s32.totalorder %s19, 0
      %p88 = por %p86, %p87
      %s89 = ssub.s32 %s13, %s20
      %p90 = scmp.eq.s32.totalorder %s89, 0
      %s92 = sadd.s32 %s91, 1
      %s93 = scalar_select %p90, %s91, %s92
      %p96 = pneg %p90
      %p97 = scmp.eq.s32.totalorder %s13, 1
      %p98 = por %p96, %p97
      %p99 = scmp.ne.s32.totalorder %s91, %s94
      %p100 = scmp.eq.s32.totalorder %s13, 0
      %p101 = por %p99, %p100
      %p102 = scmp.ne.s32.totalorder %s91, %s94
      %p103 = scmp.eq.s32.totalorder %s18, 1
      %p104 = por %p102, %p103
      %p105 = scmp.ne.s32.totalorder %s94, %s95
      %p106 = scmp.eq.s32.totalorder %s18, 0
      %p107 = por %p105, %p106
      %p108 = scmp.ne.s32.totalorder %s94, %s95
      %p109 = scmp.eq.s32.totalorder %s19, 1
      %p110 = por %p108, %p109
      %p112 = scmp.ne.s32.totalorder %s95, %s111
      %p113 = scmp.eq.s32.totalorder %s19, 0
      %p114 = por %p112, %p113
      %p115 = scmp.le.s32.totalorder 1, %s13
      %p116 = scmp.lt.s32.totalorder %s13, 3
      %p117 = pnand %p115, %p116
      %p118 = pneg %p117
      // Predicated region
      $region9: #{spatial_attention.3} parent=5 // pred_check
        _
      $region10: #{spatial_attention.3} parent=5 // pred_check_branch
        %120 = sbr.rel (%p117) target = $region12
      $region11: #{spatial_attention.3} parent=5 // pred_region
        %s121 = ssub.s32 %s13, 1
        // Predicated region
        $region13: #{spatial_attention.3} parent=11 // pred_check
          %p122 = pneg %p34
        $region14: #{spatial_attention.3} parent=11 // pred_check_branch
          %124 = sbr.rel (%p122) target = $region16
        $region15: #{spatial_attention.3} parent=11 // pred_region
          _
        $region16: #{spatial_attention.3} parent=11 // pred_fallthru
          _
        // Predicated region
        $region17: #{spatial_attention.3} parent=11 // pred_check
          %p125 = pneg %p55
        $region18: #{spatial_attention.3} parent=11 // pred_check_branch
          %127 = sbr.rel (%p125) target = $region20
        $region19: #{spatial_attention.3} parent=11 // pred_region
          _
        $region20: #{spatial_attention.3} parent=11 // pred_fallthru
          _
      $region12: #{spatial_attention.3} parent=5 // pred_fallthru
        _
      %p128 = scmp.lt.s32.totalorder %s13, 2
      // Predicated region
      $region21: #{spatial_attention.3} parent=5 // pred_check
        %p129 = pneg %p128
      $region22: #{spatial_attention.3} parent=5 // pred_check_branch
        %131 = sbr.rel (%p129) target = $region24
      $region23: #{spatial_attention.3} parent=5 // pred_region
        // Predicated region
        $region25: #{spatial_attention.3} parent=23 // pred_check
          %p132 = pneg %p75
        $region26: #{spatial_attention.3} parent=23 // pred_check_branch
          %134 = sbr.rel (%p132) target = $region28
        $region27: #{spatial_attention.3} parent=23 // pred_region
          %p135 = scmp.lt.s32.totalorder %s13, 1
          %s136 = scalar_select %p135, %s13, 1
          %s137 = smul.addr %s136, 3
          %s138 = smul.addr %s137, 8
          %s139 = scalar_lea.vmem %s2, %s138
        $region28: #{spatial_attention.3} parent=23 // pred_fallthru
          _
      $region24: #{spatial_attention.3} parent=5 // pred_fallthru
        _
      %p140 = scmp.le.s32.totalorder 1, %s13
      %p141 = scmp.lt.s32.totalorder %s13, 3
      %p142 = pnand %p140, %p141
      %p143 = pneg %p142
      // Predicated region
      $region29: #{spatial_attention.3} parent=5 // pred_check
        _
      $region30: #{spatial_attention.3} parent=5 // pred_check_branch
        %145 = sbr.rel (%p142) target = $region32
      $region31: #{spatial_attention.3} parent=5 // pred_region
        %s146 = ssub.s32 %s13, 1
        %p147 = pneg %p34
        %p148 = pneg %p31
        %p149 = pneg %p55
        %p150 = pneg %p52
        %p151 = scmp.lt.s32.totalorder %s18, 1
        %s152 = scalar_select %p151, %s18, 1
        %s153 = smul.addr %s152, 3
        %s154 = smul.addr %s153, 8
        %s155 = scalar_lea.vmem %s2, %s154
        %p156 = pneg %p81
        %p157 = pneg %p78
        %p158 = pneg %p107
        %p159 = pneg %p104
        %s160 = sand.u32 %s94, 1
        %s161 = scalar_lea.sflag [#allocation4], %s160
        %s162 = sand.u32 %s94, 1
        %s163 = smul.addr %s162, 16
        %s164 = scalar_lea.vmem [#allocation3], %s163
        %p165 = scmp.lt.s32.totalorder %s18, 1
        %s166 = scalar_select %p165, %s18, 1
        %s167 = smul.addr %s166, 3
        %s168 = smul.addr %s167, 8
        %s169 = scalar_lea.vmem %s2, %s168
        %v170 = vld [vmem:[%s169] sm:$0xff]
        %v171 = vld [vmem:[%s169 + $0x8] sm:$0xff]
        %v172 = vld [vmem:[%s169 + $0x10] sm:$0x3f]
        %v173 = vld [vmem:[%s1] sm:$0xff]
        %v174 = vld [vmem:[%s1 + $0x8] sm:$0xff]
        %v175 = vld [vmem:[%s1 + $0x10] sm:$0xff]
        %v176 = vld [vmem:[%s1 + $0x18] sm:$0xff]
        %s177 = scalar_lea.vmem %s1, 32
        %v178 = vld [vmem:[%s177] sm:$0xff]
        %v179 = vld [vmem:[%s177 + $0x8] sm:$0xff]
        %v180 = vld [vmem:[%s177 + $0x10] sm:$0xff]
        %v181 = vld [vmem:[%s177 + $0x18] sm:$0xff]
        %s182 = scalar_lea.vmem %s1, 64
        %v183 = vld [vmem:[%s182] sm:$0xff]
        %v184 = vld [vmem:[%s182 + $0x8] sm:$0xff]
        %v185 = vld [vmem:[%s182 + $0x10] sm:$0xff]
        %v186 = vld [vmem:[%s182 + $0x18] sm:$0xff]
        %vm190 = vcmask 1045504
        %v191 = vrot.slane %v170, 2
        %v192 = vrot.slane %v171, 2
        %v193 = vsel %vm190, %v191, %v192
        %v194 = vrot.slane %v172, 2
        %v195 = vsel %vm190, %v192, %v194
        %vm196 = vcmask 261120
        %v197 = vsel %vm196, %v193, 0
        %v199 = vsel %vm196, %v195, 0
        %201 = vmatprep.subr.mxu0 0.0
        %202 = vmatpush1.msra.mxu0 0.0
        %203 = vmatprep.subr.mxu0 0.0
        %204 = vmatpush1.msra.mxu0 0.0
        %205 = vmatprep.subr.mxu0 0.0
        %206 = vmatpush1.msra.mxu0 0.0
        %207 = vmatprep.subr.mxu0 0.0
        %208 = vmatpush1.msra.mxu0 0.0
        %209 = vmatprep.subr.mxu0 0.0
        %210 = vmatpush1.msra.mxu0 0.0
        %211 = vmatprep.subr.mxu0 0.0
        %212 = vmatpush1.msra.mxu0 0.0
        %213 = vmatprep.subr.mxu0 0.0
        %214 = vmatpush1.msra.mxu0 0.0
        %215 = vmatprep.subr.mxu0 0.0
        %216 = vmatpush1.msra.mxu0 0.0
        %217 = vmatprep.subr.mxu0 0.0
        %218 = vmatpush1.msra.mxu0 0.0
        %219 = vmatprep.subr.mxu0 0.0
        %220 = vmatpush1.msra.mxu0 0.0
        %221 = vmatprep.subr.mxu0 0.0
        %222 = vmatpush1.msra.mxu0 0.0
        %223 = vmatprep.subr.mxu0 0.0
        %224 = vmatpush1.msra.mxu0 0.0
        %225 = vmatprep.subr.mxu0 0.0
        %226 = vmatpush1.msra.mxu0 %v186
        %227 = vmatprep.subr.mxu0 0.0
        %228 = vmatpush1.msra.mxu0 %v185
        %229 = vmatprep.subr.mxu0 0.0
        %230 = vmatpush1.msra.mxu0 %v184
        %231 = vmatprep.subr.mxu0 0.0
        %232 = vmatpush1.msra.mxu0 %v183
        %233 = vmatprep.subr.mxu0 0.0
        %234 = vmatpush2.msra.mxu0 0.0
        %235 = vmatprep.subr.mxu0 0.0
        %236 = vmatpush2.msra.mxu0 0.0
        %237 = vmatprep.subr.mxu0 0.0
        %238 = vmatpush2.msra.mxu0 0.0
        %239 = vmatprep.subr.mxu0 0.0
        %240 = vmatpush2.msra.mxu0 0.0
        %241 = vmatprep.subr.mxu0 0.0
        %242 = vmatpush2.msra.mxu0 0.0
        %243 = vmatprep.subr.mxu0 0.0
        %244 = vmatpush2.msra.mxu0 0.0
        %245 = vmatprep.subr.mxu0 0.0
        %246 = vmatpush2.msra.mxu0 0.0
        %247 = vmatprep.subr.mxu0 0.0
        %248 = vmatpush2.msra.mxu0 0.0
        %249 = vmatprep.subr.mxu0 0.0
        %250 = vmatpush2.msra.mxu0 0.0
        %251 = vmatprep.subr.mxu0 0.0
        %252 = vmatpush2.msra.mxu0 0.0
        %253 = vmatprep.subr.mxu0 0.0
        %254 = vmatpush2.msra.mxu0 0.0
        %255 = vmatprep.subr.mxu0 0.0
        %256 = vmatpush2.msra.mxu0 0.0
        %257 = vmatprep.subr.mxu0 0.0
        %258 = vmatpush2.msra.mxu0 0.0
        %259 = vmatprep.subr.mxu0 0.0
        %260 = vmatpush2.msra.mxu0 0.0
        %261 = vmatprep.subr.mxu0 0.0
        %262 = vmatpush2.msra.mxu0 0.0
        %263 = vmatprep.subr.mxu0 0.0
        %264 = vmatpush2.msra.mxu0 0.0
        %265 = vmatprep.mubr.f32.mxu0 0.0
        %266 = vmatmul.mubr.f32.gmra.mxu0 %v197
        %v267 = vpop.f32.mrf.mxu0
        %v268 = vadd.f32 0.0, %v267
        %v269 = vpop.f32.mrf.mxu0
        %270 = vmatprep.mubr.f32.mxu0 0.0
        %271 = vmatmul.mubr.f32.gmra.mxu0 %v199
        %v272 = vpop.f32.mrf.mxu0
        %v273 = vadd.f32 0.0, %v272
        %v274 = vpop.f32.mrf.mxu0
        %275 = vdwg.mxu0
        %v276 = vsel %vm196, %v170, 0
        %v278 = vsel %vm196, %v171, 0
        %280 = vmatprep.subr.mxu0 0.0
        %281 = vmatpush1.msra.mxu0 0.0
        %282 = vmatprep.subr.mxu0 0.0
        %283 = vmatpush1.msra.mxu0 0.0
        %284 = vmatprep.subr.mxu0 0.0
        %285 = vmatpush1.msra.mxu0 0.0
        %286 = vmatprep.subr.mxu0 0.0
        %287 = vmatpush1.msra.mxu0 0.0
        %288 = vmatprep.subr.mxu0 0.0
        %289 = vmatpush1.msra.mxu0 0.0
        %290 = vmatprep.subr.mxu0 0.0
        %291 = vmatpush1.msra.mxu0 0.0
        %292 = vmatprep.subr.mxu0 0.0
        %293 = vmatpush1.msra.mxu0 0.0
        %294 = vmatprep.subr.mxu0 0.0
        %295 = vmatpush1.msra.mxu0 0.0
        %296 = vmatprep.subr.mxu0 0.0
        %297 = vmatpush1.msra.mxu0 0.0
        %298 = vmatprep.subr.mxu0 0.0
        %299 = vmatpush1.msra.mxu0 0.0
        %300 = vmatprep.subr.mxu0 0.0
        %301 = vmatpush1.msra.mxu0 0.0
        %302 = vmatprep.subr.mxu0 0.0
        %303 = vmatpush1.msra.mxu0 0.0
        %304 = vmatprep.subr.mxu0 0.0
        %305 = vmatpush1.msra.mxu0 %v176
        %306 = vmatprep.subr.mxu0 0.0
        %307 = vmatpush1.msra.mxu0 %v175
        %308 = vmatprep.subr.mxu0 0.0
        %309 = vmatpush1.msra.mxu0 %v174
        %310 = vmatprep.subr.mxu0 0.0
        %311 = vmatpush1.msra.mxu0 %v173
        %312 = vmatprep.subr.mxu0 0.0
        %313 = vmatpush2.msra.mxu0 0.0
        %314 = vmatprep.subr.mxu0 0.0
        %315 = vmatpush2.msra.mxu0 0.0
        %316 = vmatprep.subr.mxu0 0.0
        %317 = vmatpush2.msra.mxu0 0.0
        %318 = vmatprep.subr.mxu0 0.0
        %319 = vmatpush2.msra.mxu0 0.0
        %320 = vmatprep.subr.mxu0 0.0
        %321 = vmatpush2.msra.mxu0 0.0
        %322 = vmatprep.subr.mxu0 0.0
        %323 = vmatpush2.msra.mxu0 0.0
        %324 = vmatprep.subr.mxu0 0.0
        %325 = vmatpush2.msra.mxu0 0.0
        %326 = vmatprep.subr.mxu0 0.0
        %327 = vmatpush2.msra.mxu0 0.0
        %328 = vmatprep.subr.mxu0 0.0
        %329 = vmatpush2.msra.mxu0 0.0
        %330 = vmatprep.subr.mxu0 0.0
        %331 = vmatpush2.msra.mxu0 0.0
        %332 = vmatprep.subr.mxu0 0.0
        %333 = vmatpush2.msra.mxu0 0.0
        %334 = vmatprep.subr.mxu0 0.0
        %335 = vmatpush2.msra.mxu0 0.0
        %336 = vmatprep.subr.mxu0 0.0
        %337 = vmatpush2.msra.mxu0 0.0
        %338 = vmatprep.subr.mxu0 0.0
        %339 = vmatpush2.msra.mxu0 0.0
        %340 = vmatprep.subr.mxu0 0.0
        %341 = vmatpush2.msra.mxu0 0.0
        %342 = vmatprep.subr.mxu0 0.0
        %343 = vmatpush2.msra.mxu0 0.0
        %344 = vmatprep.mubr.f32.mxu0 0.0
        %345 = vmatmul.mubr.f32.gmra.mxu0 %v276
        %v346 = vpop.f32.mrf.mxu0
        %v347 = vadd.f32 %v268, %v346
        %v348 = vpop.f32.mrf.mxu0
        %349 = vmatprep.mubr.f32.mxu0 0.0
        %350 = vmatmul.mubr.f32.gmra.mxu0 %v278
        %v351 = vpop.f32.mrf.mxu0
        %v352 = vadd.f32 %v273, %v351
        %v353 = vpop.f32.mrf.mxu0
        %354 = vdwg.mxu0
        %s355 = scalar_lea.vmem %s1, 96
        %v356 = vld [vmem:[%s355] sm:$0xff]
        %v357 = vld [vmem:[%s355 + $0x8] sm:$0xff]
        %v358 = vld [vmem:[%s355 + $0x10] sm:$0xff]
        %v359 = vld [vmem:[%s355 + $0x18] sm:$0xff]
        %vm360 = vcmask 1044480
        %v361 = vrot.slane %v170, 3
        %v362 = vrot.slane %v171, 3
        %v363 = vsel %vm360, %v361, %v362
        %v364 = vrot.slane %v172, 3
        %v365 = vsel %vm360, %v362, %v364
        %v366 = vsel %vm196, %v363, 0
        %v368 = vsel %vm196, %v365, 0
        %370 = vmatprep.subr.mxu0 0.0
        %371 = vmatpush1.msra.mxu0 0.0
        %372 = vmatprep.subr.mxu0 0.0
        %373 = vmatpush1.msra.mxu0 0.0
        %374 = vmatprep.subr.mxu0 0.0
        %375 = vmatpush1.msra.mxu0 0.0
        %376 = vmatprep.subr.mxu0 0.0
        %377 = vmatpush1.msra.mxu0 0.0
        %378 = vmatprep.subr.mxu0 0.0
        %379 = vmatpush1.msra.mxu0 0.0
        %380 = vmatprep.subr.mxu0 0.0
        %381 = vmatpush1.msra.mxu0 0.0
        %382 = vmatprep.subr.mxu0 0.0
        %383 = vmatpush1.msra.mxu0 0.0
        %384 = vmatprep.subr.mxu0 0.0
        %385 = vmatpush1.msra.mxu0 0.0
        %386 = vmatprep.subr.mxu0 0.0
        %387 = vmatpush1.msra.mxu0 0.0
        %388 = vmatprep.subr.mxu0 0.0
        %389 = vmatpush1.msra.mxu0 0.0
        %390 = vmatprep.subr.mxu0 0.0
        %391 = vmatpush1.msra.mxu0 0.0
        %392 = vmatprep.subr.mxu0 0.0
        %393 = vmatpush1.msra.mxu0 0.0
        %394 = vmatprep.subr.mxu0 0.0
        %395 = vmatpush1.msra.mxu0 %v359
        %396 = vmatprep.subr.mxu0 0.0
        %397 = vmatpush1.msra.mxu0 %v358
        %398 = vmatprep.subr.mxu0 0.0
        %399 = vmatpush1.msra.mxu0 %v357
        %400 = vmatprep.subr.mxu0 0.0
        %401 = vmatpush1.msra.mxu0 %v356
        %402 = vmatprep.subr.mxu0 0.0
        %403 = vmatpush2.msra.mxu0 0.0
        %404 = vmatprep.subr.mxu0 0.0
        %405 = vmatpush2.msra.mxu0 0.0
        %406 = vmatprep.subr.mxu0 0.0
        %407 = vmatpush2.msra.mxu0 0.0
        %408 = vmatprep.subr.mxu0 0.0
        %409 = vmatpush2.msra.mxu0 0.0
        %410 = vmatprep.subr.mxu0 0.0
        %411 = vmatpush2.msra.mxu0 0.0
        %412 = vmatprep.subr.mxu0 0.0
        %413 = vmatpush2.msra.mxu0 0.0
        %414 = vmatprep.subr.mxu0 0.0
        %415 = vmatpush2.msra.mxu0 0.0
        %416 = vmatprep.subr.mxu0 0.0
        %417 = vmatpush2.msra.mxu0 0.0
        %418 = vmatprep.subr.mxu0 0.0
        %419 = vmatpush2.msra.mxu0 0.0
        %420 = vmatprep.subr.mxu0 0.0
        %421 = vmatpush2.msra.mxu0 0.0
        %422 = vmatprep.subr.mxu0 0.0
        %423 = vmatpush2.msra.mxu0 0.0
        %424 = vmatprep.subr.mxu0 0.0
        %425 = vmatpush2.msra.mxu0 0.0
        %426 = vmatprep.subr.mxu0 0.0
        %427 = vmatpush2.msra.mxu0 0.0
        %428 = vmatprep.subr.mxu0 0.0
        %429 = vmatpush2.msra.mxu0 0.0
        %430 = vmatprep.subr.mxu0 0.0
        %431 = vmatpush2.msra.mxu0 0.0
        %432 = vmatprep.subr.mxu0 0.0
        %433 = vmatpush2.msra.mxu0 0.0
        %434 = vmatprep.mubr.f32.mxu0 0.0
        %435 = vmatmul.mubr.f32.gmra.mxu0 %v366
        %v436 = vpop.f32.mrf.mxu0
        %v437 = vadd.f32 0.0, %v436
        %v438 = vpop.f32.mrf.mxu0
        %439 = vmatprep.mubr.f32.mxu0 0.0
        %440 = vmatmul.mubr.f32.gmra.mxu0 %v368
        %v441 = vpop.f32.mrf.mxu0
        %v442 = vadd.f32 0.0, %v441
        %v443 = vpop.f32.mrf.mxu0
        %444 = vdwg.mxu0
        %vm445 = vcmask 1046528
        %v446 = vrot.slane %v170, 1
        %v447 = vrot.slane %v171, 1
        %v448 = vsel %vm445, %v446, %v447
        %v449 = vrot.slane %v172, 1
        %v450 = vsel %vm445, %v447, %v449
        %v451 = vsel %vm196, %v448, 0
        %v453 = vsel %vm196, %v450, 0
        %455 = vmatprep.subr.mxu0 0.0
        %456 = vmatpush1.msra.mxu0 0.0
        %457 = vmatprep.subr.mxu0 0.0
        %458 = vmatpush1.msra.mxu0 0.0
        %459 = vmatprep.subr.mxu0 0.0
        %460 = vmatpush1.msra.mxu0 0.0
        %461 = vmatprep.subr.mxu0 0.0
        %462 = vmatpush1.msra.mxu0 0.0
        %463 = vmatprep.subr.mxu0 0.0
        %464 = vmatpush1.msra.mxu0 0.0
        %465 = vmatprep.subr.mxu0 0.0
        %466 = vmatpush1.msra.mxu0 0.0
        %467 = vmatprep.subr.mxu0 0.0
        %468 = vmatpush1.msra.mxu0 0.0
        %469 = vmatprep.subr.mxu0 0.0
        %470 = vmatpush1.msra.mxu0 0.0
        %471 = vmatprep.subr.mxu0 0.0
        %472 = vmatpush1.msra.mxu0 0.0
        %473 = vmatprep.subr.mxu0 0.0
        %474 = vmatpush1.msra.mxu0 0.0
        %475 = vmatprep.subr.mxu0 0.0
        %476 = vmatpush1.msra.mxu0 0.0
        %477 = vmatprep.subr.mxu0 0.0
        %478 = vmatpush1.msra.mxu0 0.0
        %479 = vmatprep.subr.mxu0 0.0
        %480 = vmatpush1.msra.mxu0 %v181
        %481 = vmatprep.subr.mxu0 0.0
        %482 = vmatpush1.msra.mxu0 %v180
        %483 = vmatprep.subr.mxu0 0.0
        %484 = vmatpush1.msra.mxu0 %v179
        %485 = vmatprep.subr.mxu0 0.0
        %486 = vmatpush1.msra.mxu0 %v178
        %487 = vmatprep.subr.mxu0 0.0
        %488 = vmatpush2.msra.mxu0 0.0
        %489 = vmatprep.subr.mxu0 0.0
        %490 = vmatpush2.msra.mxu0 0.0
        %491 = vmatprep.subr.mxu0 0.0
        %492 = vmatpush2.msra.mxu0 0.0
        %493 = vmatprep.subr.mxu0 0.0
        %494 = vmatpush2.msra.mxu0 0.0
        %495 = vmatprep.subr.mxu0 0.0
        %496 = vmatpush2.msra.mxu0 0.0
        %497 = vmatprep.subr.mxu0 0.0
        %498 = vmatpush2.msra.mxu0 0.0
        %499 = vmatprep.subr.mxu0 0.0
        %500 = vmatpush2.msra.mxu0 0.0
        %501 = vmatprep.subr.mxu0 0.0
        %502 = vmatpush2.msra.mxu0 0.0
        %503 = vmatprep.subr.mxu0 0.0
        %504 = vmatpush2.msra.mxu0 0.0
        %505 = vmatprep.subr.mxu0 0.0
        %506 = vmatpush2.msra.mxu0 0.0
        %507 = vmatprep.subr.mxu0 0.0
        %508 = vmatpush2.msra.mxu0 0.0
        %509 = vmatprep.subr.mxu0 0.0
        %510 = vmatpush2.msra.mxu0 0.0
        %511 = vmatprep.subr.mxu0 0.0
        %512 = vmatpush2.msra.mxu0 0.0
        %513 = vmatprep.subr.mxu0 0.0
        %514 = vmatpush2.msra.mxu0 0.0
        %515 = vmatprep.subr.mxu0 0.0
        %516 = vmatpush2.msra.mxu0 0.0
        %517 = vmatprep.subr.mxu0 0.0
        %518 = vmatpush2.msra.mxu0 0.0
        %519 = vmatprep.mubr.f32.mxu0 0.0
        %520 = vmatmul.mubr.f32.gmra.mxu0 %v451
        %v521 = vpop.f32.mrf.mxu0
        %v522 = vadd.f32 %v437, %v521
        %v523 = vpop.f32.mrf.mxu0
        %524 = vmatprep.mubr.f32.mxu0 0.0
        %525 = vmatmul.mubr.f32.gmra.mxu0 %v453
        %v526 = vpop.f32.mrf.mxu0
        %v527 = vadd.f32 %v442, %v526
        %v528 = vpop.f32.mrf.mxu0
        %529 = vdwg.mxu0
        %s530 = scalar_lea.vmem %s1, 128
        %v531 = vld [vmem:[%s530] sm:$0xff]
        %v532 = vld [vmem:[%s530 + $0x8] sm:$0xff]
        %v533 = vld [vmem:[%s530 + $0x10] sm:$0xff]
        %v534 = vld [vmem:[%s530 + $0x18] sm:$0xff]
        %vm535 = vcmask 1043456
        %v536 = vrot.slane %v170, 4
        %v537 = vrot.slane %v171, 4
        %v538 = vsel %vm535, %v536, %v537
        %v539 = vrot.slane %v172, 4
        %v540 = vsel %vm535, %v537, %v539
        %v541 = vsel %vm196, %v538, 0
        %v543 = vsel %vm196, %v540, 0
        %545 = vmatprep.subr.mxu0 0.0
        %546 = vmatpush1.msra.mxu0 0.0
        %547 = vmatprep.subr.mxu0 0.0
        %548 = vmatpush1.msra.mxu0 0.0
        %549 = vmatprep.subr.mxu0 0.0
        %550 = vmatpush1.msra.mxu0 0.0
        %551 = vmatprep.subr.mxu0 0.0
        %552 = vmatpush1.msra.mxu0 0.0
        %553 = vmatprep.subr.mxu0 0.0
        %554 = vmatpush1.msra.mxu0 0.0
        %555 = vmatprep.subr.mxu0 0.0
        %556 = vmatpush1.msra.mxu0 0.0
        %557 = vmatprep.subr.mxu0 0.0
        %558 = vmatpush1.msra.mxu0 0.0
        %559 = vmatprep.subr.mxu0 0.0
        %560 = vmatpush1.msra.mxu0 0.0
        %561 = vmatprep.subr.mxu0 0.0
        %562 = vmatpush1.msra.mxu0 0.0
        %563 = vmatprep.subr.mxu0 0.0
        %564 = vmatpush1.msra.mxu0 0.0
        %565 = vmatprep.subr.mxu0 0.0
        %566 = vmatpush1.msra.mxu0 0.0
        %567 = vmatprep.subr.mxu0 0.0
        %568 = vmatpush1.msra.mxu0 0.0
        %569 = vmatprep.subr.mxu0 0.0
        %570 = vmatpush1.msra.mxu0 %v534
        %571 = vmatprep.subr.mxu0 0.0
        %572 = vmatpush1.msra.mxu0 %v533
        %573 = vmatprep.subr.mxu0 0.0
        %574 = vmatpush1.msra.mxu0 %v532
        %575 = vmatprep.subr.mxu0 0.0
        %576 = vmatpush1.msra.mxu0 %v531
        %577 = vmatprep.subr.mxu0 0.0
        %578 = vmatpush2.msra.mxu0 0.0
        %579 = vmatprep.subr.mxu0 0.0
        %580 = vmatpush2.msra.mxu0 0.0
        %581 = vmatprep.subr.mxu0 0.0
        %582 = vmatpush2.msra.mxu0 0.0
        %583 = vmatprep.subr.mxu0 0.0
        %584 = vmatpush2.msra.mxu0 0.0
        %585 = vmatprep.subr.mxu0 0.0
        %586 = vmatpush2.msra.mxu0 0.0
        %587 = vmatprep.subr.mxu0 0.0
        %588 = vmatpush2.msra.mxu0 0.0
        %589 = vmatprep.subr.mxu0 0.0
        %590 = vmatpush2.msra.mxu0 0.0
        %591 = vmatprep.subr.mxu0 0.0
        %592 = vmatpush2.msra.mxu0 0.0
        %593 = vmatprep.subr.mxu0 0.0
        %594 = vmatpush2.msra.mxu0 0.0
        %595 = vmatprep.subr.mxu0 0.0
        %596 = vmatpush2.msra.mxu0 0.0
        %597 = vmatprep.subr.mxu0 0.0
        %598 = vmatpush2.msra.mxu0 0.0
        %599 = vmatprep.subr.mxu0 0.0
        %600 = vmatpush2.msra.mxu0 0.0
        %601 = vmatprep.subr.mxu0 0.0
        %602 = vmatpush2.msra.mxu0 0.0
        %603 = vmatprep.subr.mxu0 0.0
        %604 = vmatpush2.msra.mxu0 0.0
        %605 = vmatprep.subr.mxu0 0.0
        %606 = vmatpush2.msra.mxu0 0.0
        %607 = vmatprep.subr.mxu0 0.0
        %608 = vmatpush2.msra.mxu0 0.0
        %609 = vmatprep.mubr.f32.mxu0 0.0
        %610 = vmatmul.mubr.f32.gmra.mxu0 %v541
        %v611 = vpop.f32.mrf.mxu0
        %v612 = vadd.f32 0.0, %v611
        %v613 = vpop.f32.mrf.mxu0
        %614 = vmatprep.mubr.f32.mxu0 0.0
        %615 = vmatmul.mubr.f32.gmra.mxu0 %v543
        %v616 = vpop.f32.mrf.mxu0
        %v617 = vadd.f32 0.0, %v616
        %v618 = vpop.f32.mrf.mxu0
        %619 = vdwg.mxu0
        %v620 = vadd.f32 %v347, %v612
        %v621 = vadd.f32 %v352, %v617
        %s622 = scalar_lea.vmem %s1, 160
        %v623 = vld [vmem:[%s622] sm:$0xff]
        %v624 = vld [vmem:[%s622 + $0x8] sm:$0xff]
        %v625 = vld [vmem:[%s622 + $0x10] sm:$0xff]
        %v626 = vld [vmem:[%s622 + $0x18] sm:$0xff]
        %vm627 = vcmask 1042432
        %v628 = vrot.slane %v170, 5
        %v629 = vrot.slane %v171, 5
        %v630 = vsel %vm627, %v628, %v629
        %v631 = vrot.slane %v172, 5
        %v632 = vsel %vm627, %v629, %v631
        %v633 = vsel %vm196, %v630, 0
        %v635 = vsel %vm196, %v632, 0
        %637 = vmatprep.subr.mxu0 0.0
        %638 = vmatpush1.msra.mxu0 0.0
        %639 = vmatprep.subr.mxu0 0.0
        %640 = vmatpush1.msra.mxu0 0.0
        %641 = vmatprep.subr.mxu0 0.0
        %642 = vmatpush1.msra.mxu0 0.0
        %643 = vmatprep.subr.mxu0 0.0
        %644 = vmatpush1.msra.mxu0 0.0
        %645 = vmatprep.subr.mxu0 0.0
        %646 = vmatpush1.msra.mxu0 0.0
        %647 = vmatprep.subr.mxu0 0.0
        %648 = vmatpush1.msra.mxu0 0.0
        %649 = vmatprep.subr.mxu0 0.0
        %650 = vmatpush1.msra.mxu0 0.0
        %651 = vmatprep.subr.mxu0 0.0
        %652 = vmatpush1.msra.mxu0 0.0
        %653 = vmatprep.subr.mxu0 0.0
        %654 = vmatpush1.msra.mxu0 0.0
        %655 = vmatprep.subr.mxu0 0.0
        %656 = vmatpush1.msra.mxu0 0.0
        %657 = vmatprep.subr.mxu0 0.0
        %658 = vmatpush1.msra.mxu0 0.0
        %659 = vmatprep.subr.mxu0 0.0
        %660 = vmatpush1.msra.mxu0 0.0
        %661 = vmatprep.subr.mxu0 0.0
        %662 = vmatpush1.msra.mxu0 %v626
        %663 = vmatprep.subr.mxu0 0.0
        %664 = vmatpush1.msra.mxu0 %v625
        %665 = vmatprep.subr.mxu0 0.0
        %666 = vmatpush1.msra.mxu0 %v624
        %667 = vmatprep.subr.mxu0 0.0
        %668 = vmatpush1.msra.mxu0 %v623
        %669 = vmatprep.subr.mxu0 0.0
        %670 = vmatpush2.msra.mxu0 0.0
        %671 = vmatprep.subr.mxu0 0.0
        %672 = vmatpush2.msra.mxu0 0.0
        %673 = vmatprep.subr.mxu0 0.0
        %674 = vmatpush2.msra.mxu0 0.0
        %675 = vmatprep.subr.mxu0 0.0
        %676 = vmatpush2.msra.mxu0 0.0
        %677 = vmatprep.subr.mxu0 0.0
        %678 = vmatpush2.msra.mxu0 0.0
        %679 = vmatprep.subr.mxu0 0.0
        %680 = vmatpush2.msra.mxu0 0.0
        %681 = vmatprep.subr.mxu0 0.0
        %682 = vmatpush2.msra.mxu0 0.0
        %683 = vmatprep.subr.mxu0 0.0
        %684 = vmatpush2.msra.mxu0 0.0
        %685 = vmatprep.subr.mxu0 0.0
        %686 = vmatpush2.msra.mxu0 0.0
        %687 = vmatprep.subr.mxu0 0.0
        %688 = vmatpush2.msra.mxu0 0.0
        %689 = vmatprep.subr.mxu0 0.0
        %690 = vmatpush2.msra.mxu0 0.0
        %691 = vmatprep.subr.mxu0 0.0
        %692 = vmatpush2.msra.mxu0 0.0
        %693 = vmatprep.subr.mxu0 0.0
        %694 = vmatpush2.msra.mxu0 0.0
        %695 = vmatprep.subr.mxu0 0.0
        %696 = vmatpush2.msra.mxu0 0.0
        %697 = vmatprep.subr.mxu0 0.0
        %698 = vmatpush2.msra.mxu0 0.0
        %699 = vmatprep.subr.mxu0 0.0
        %700 = vmatpush2.msra.mxu0 0.0
        %701 = vmatprep.mubr.f32.mxu0 0.0
        %702 = vmatmul.mubr.f32.gmra.mxu0 %v633
        %v703 = vpop.f32.mrf.mxu0
        %v704 = vadd.f32 0.0, %v703
        %v705 = vpop.f32.mrf.mxu0
        %706 = vmatprep.mubr.f32.mxu0 0.0
        %707 = vmatmul.mubr.f32.gmra.mxu0 %v635
        %v708 = vpop.f32.mrf.mxu0
        %v709 = vadd.f32 0.0, %v708
        %v710 = vpop.f32.mrf.mxu0
        %711 = vdwg.mxu0
        %v712 = vadd.f32 %v522, %v704
        %v713 = vadd.f32 %v527, %v709
        %s714 = scalar_lea.vmem %s1, 192
        %v715 = vld [vmem:[%s714] sm:$0xff]
        %v716 = vld [vmem:[%s714 + $0x8] sm:$0xff]
        %v717 = vld [vmem:[%s714 + $0x10] sm:$0xff]
        %v718 = vld [vmem:[%s714 + $0x18] sm:$0xff]
        %vm719 = vcmask 1041408
        %v720 = vrot.slane %v170, 6
        %v721 = vrot.slane %v171, 6
        %v722 = vsel %vm719, %v720, %v721
        %v723 = vrot.slane %v172, 6
        %v724 = vsel %vm719, %v721, %v723
        %v725 = vsel %vm196, %v722, 0
        %v727 = vsel %vm196, %v724, 0
        %729 = vmatprep.subr.mxu0 0.0
        %730 = vmatpush1.msra.mxu0 0.0
        %731 = vmatprep.subr.mxu0 0.0
        %732 = vmatpush1.msra.mxu0 0.0
        %733 = vmatprep.subr.mxu0 0.0
        %734 = vmatpush1.msra.mxu0 0.0
        %735 = vmatprep.subr.mxu0 0.0
        %736 = vmatpush1.msra.mxu0 0.0
        %737 = vmatprep.subr.mxu0 0.0
        %738 = vmatpush1.msra.mxu0 0.0
        %739 = vmatprep.subr.mxu0 0.0
        %740 = vmatpush1.msra.mxu0 0.0
        %741 = vmatprep.subr.mxu0 0.0
        %742 = vmatpush1.msra.mxu0 0.0
        %743 = vmatprep.subr.mxu0 0.0
        %744 = vmatpush1.msra.mxu0 0.0
        %745 = vmatprep.subr.mxu0 0.0
        %746 = vmatpush1.msra.mxu0 0.0
        %747 = vmatprep.subr.mxu0 0.0
        %748 = vmatpush1.msra.mxu0 0.0
        %749 = vmatprep.subr.mxu0 0.0
        %750 = vmatpush1.msra.mxu0 0.0
        %751 = vmatprep.subr.mxu0 0.0
        %752 = vmatpush1.msra.mxu0 0.0
        %753 = vmatprep.subr.mxu0 0.0
        %754 = vmatpush1.msra.mxu0 %v718
        %755 = vmatprep.subr.mxu0 0.0
        %756 = vmatpush1.msra.mxu0 %v717
        %757 = vmatprep.subr.mxu0 0.0
        %758 = vmatpush1.msra.mxu0 %v716
        %759 = vmatprep.subr.mxu0 0.0
        %760 = vmatpush1.msra.mxu0 %v715
        %761 = vmatprep.subr.mxu0 0.0
        %762 = vmatpush2.msra.mxu0 0.0
        %763 = vmatprep.subr.mxu0 0.0
        %764 = vmatpush2.msra.mxu0 0.0
        %765 = vmatprep.subr.mxu0 0.0
        %766 = vmatpush2.msra.mxu0 0.0
        %767 = vmatprep.subr.mxu0 0.0
        %768 = vmatpush2.msra.mxu0 0.0
        %769 = vmatprep.subr.mxu0 0.0
        %770 = vmatpush2.msra.mxu0 0.0
        %771 = vmatprep.subr.mxu0 0.0
        %772 = vmatpush2.msra.mxu0 0.0
        %773 = vmatprep.subr.mxu0 0.0
        %774 = vmatpush2.msra.mxu0 0.0
        %775 = vmatprep.subr.mxu0 0.0
        %776 = vmatpush2.msra.mxu0 0.0
        %777 = vmatprep.subr.mxu0 0.0
        %778 = vmatpush2.msra.mxu0 0.0
        %779 = vmatprep.subr.mxu0 0.0
        %780 = vmatpush2.msra.mxu0 0.0
        %781 = vmatprep.subr.mxu0 0.0
        %782 = vmatpush2.msra.mxu0 0.0
        %783 = vmatprep.subr.mxu0 0.0
        %784 = vmatpush2.msra.mxu0 0.0
        %785 = vmatprep.subr.mxu0 0.0
        %786 = vmatpush2.msra.mxu0 0.0
        %787 = vmatprep.subr.mxu0 0.0
        %788 = vmatpush2.msra.mxu0 0.0
        %789 = vmatprep.subr.mxu0 0.0
        %790 = vmatpush2.msra.mxu0 0.0
        %791 = vmatprep.subr.mxu0 0.0
        %792 = vmatpush2.msra.mxu0 0.0
        %793 = vmatprep.mubr.f32.mxu0 0.0
        %794 = vmatmul.mubr.f32.gmra.mxu0 %v725
        %v795 = vpop.f32.mrf.mxu0
        %v796 = vadd.f32 0.0, %v795
        %v797 = vpop.f32.mrf.mxu0
        %798 = vmatprep.mubr.f32.mxu0 0.0
        %799 = vmatmul.mubr.f32.gmra.mxu0 %v727
        %v800 = vpop.f32.mrf.mxu0
        %v801 = vadd.f32 0.0, %v800
        %v802 = vpop.f32.mrf.mxu0
        %803 = vdwg.mxu0
        %v804 = vadd.f32 %v620, %v796
        %v805 = vadd.f32 %v621, %v801
        %v806 = vadd.f32 %v804, %v712
        %v807 = vadd.f32 %v805, %v713
        %s808 = sld [smem:[#allocation2]]
        %v809 = vstv %s808
        %v810 = vadd.f32 %v806, %v809
        %v811 = vadd.f32 %v807, %v809
        %v812 = vxor.u32 %v810, 2147483648
        %v813 = vxor.u32 %v811, 2147483648
        %v814 = vmul.f32 %v812, 1.442695
        %v815 = vpow.pop %v814
        %v816 = vmul.f32 %v813, 1.442695
        %v817 = vpow.pop %v816
        %v818 = vadd.f32 %v815, 1.0
        %v819 = vadd.f32 %v817, 1.0
        %v820 = vrcp.pop %v818
        %v821 = vmul.f32 1.0, %v820
        %v822 = vrcp.pop %v819
        %v823 = vmul.f32 1.0, %v822
        %vm824 = vcmask 130048
        %825 = vst.msk [vmem:[%s164] sm:$0xff] %vm824, %v821
        %826 = vst.msk [vmem:[%s164 + $0x8] sm:$0xff] %vm824, %v823
        %s827 = sand.u32 %s94, 1
        %s828 = scalar_lea.sflag [#allocation4], %s827
        %s829 = sand.u32 %s94, 1
        %s830 = smul.addr %s829, 16
        %s831 = scalar_lea.vmem [#allocation3], %s830
        // Predicated region
        $region33: #{spatial_attention.3} parent=31 // pred_check
          %p832 = pneg %p104
        $region34: #{spatial_attention.3} parent=31 // pred_check_branch
          %834 = sbr.rel (%p832) target = $region36
        $region35: #{spatial_attention.3} parent=31 // pred_region
          %s836 = ssub.s32 256, 256
          %837 = vsyncadd %s828, %s836
          %s838 = smul.addr %s18, 2
          %s839 = smul.addr %s838, 128
          %s840 = scalar_lea.hbm %s3, %s839
          %s841 = sshll.u32 %s831, 4
          %s842 = int_to_ptr.vmem [resolvable:$true] %s841
          %847 = dma.vmem_to_hbm [thread:$0]  %s842, 256, %s840, %s828, 128, 128, 8
        $region36: #{spatial_attention.3} parent=31 // pred_fallthru
          _
      $region32: #{spatial_attention.3} parent=5 // pred_fallthru
        _
      %p848 = scmp.le.s32.totalorder 2, %s13
      // Predicated region
      $region37: #{spatial_attention.3} parent=5 // pred_check
        %p849 = pneg %p848
      $region38: #{spatial_attention.3} parent=5 // pred_check_branch
        %851 = sbr.rel (%p849) target = $region40
      $region39: #{spatial_attention.3} parent=5 // pred_region
        %s852 = ssub.s32 %s13, 2
        // Predicated region
        $region41: #{spatial_attention.3} parent=39 // pred_check
          %p853 = pneg %p110
        $region42: #{spatial_attention.3} parent=39 // pred_check_branch
          %855 = sbr.rel (%p853) target = $region44
        $region43: #{spatial_attention.3} parent=39 // pred_region
          %s856 = sand.u32 %s95, 1
          %s857 = scalar_lea.sflag [#allocation4], %s856
          %s858 = sand.u32 %s95, 1
          %s859 = smul.addr %s858, 16
          %s860 = scalar_lea.vmem [#allocation3], %s859
          %861 = dma.done %s857, 256
        $region44: #{spatial_attention.3} parent=39 // pred_fallthru
          _
      $region40: #{spatial_attention.3} parent=5 // pred_fallthru
        _
    $region6: #{spatial_attention.3} parent=1 // loop_footer
      %s17 = sadd.s32 1, %s13
    $region7: #{spatial_attention.3} parent=1 // loop_footer_branch
      %12 = sbr.rel target = $region3
    $region8: #{spatial_attention.3} parent=1 // loop_exit
      _
    %862 = vsyncpa [#allocation4], 1
    %s863 = scalar_lea.sflag [#allocation4], 1
    %864 = vsyncpa %s863, 1

</llo_original>
